<compile_context>
chip_gen: v7x
topology: tpu7x:2x2x1
jax: 0.10.0
libtpu: 0.0.40
codegen_flags: <defaults>
</compile_context>

<pallas_src>
import jax
import jax.numpy as jnp
from jax.experimental import pallas as pl
from jax.experimental.pallas import tpu as pltpu

LRELU_SLOPE = 0.2


def _discriminator_kernel(x_ref, w1_ref, b1_ref, w2_ref, b2_ref, w3_ref, b3_ref,
                          o_ref):
    """Fused Linear->LReLU->Linear->LReLU->Linear for one tile of batch rows.

    x_ref : [TB, D]   f32   (flattened image rows; cast to bf16 in-register)
    w1_ref: [D, 512]  bf16    b1_ref: [1, 512] f32
    w2_ref: [512,256] bf16    b2_ref: [1, 256] f32
    w3_ref: [1, 256]  bf16    b3_ref: [1, 1]   f32
    o_ref : [1, TB]   f32   (lane-dense validity row)
    """
    mm_dtype = w1_ref.dtype

    # Layer 1: bf16 MXU matmul, f32 accumulate + bias, LeakyReLU on the bf16
    # tensor that feeds layer 2 (monotone, so matches the f32 order up to
    # rounding; halves VALU work on v6e/v7x packed bf16).
    x = x_ref[...].astype(mm_dtype)
    h = jnp.dot(x, w1_ref[...], preferred_element_type=jnp.float32)
    h = (h + b1_ref[...]).astype(mm_dtype)
    h = jnp.maximum(h, LRELU_SLOPE * h)                      # [TB, 512] bf16

    # Layer 2: intermediate never leaves VMEM/vregs.
    h = jnp.dot(h, w2_ref[...], preferred_element_type=jnp.float32)
    h = (h + b2_ref[...]).astype(mm_dtype)
    h = jnp.maximum(h, LRELU_SLOPE * h)                      # [TB, 256] bf16

    # Layer 3: Linear(256, 1) as an NT dot (contract the 256 axis of both
    # operands): w3[1,256] x h[TB,256] -> [1, TB]. Output is lane-dense, so no
    # 1-lane MXU weight tile and no column of masked 1-lane stores.
    o = jax.lax.dot_general(w3_ref[...], h, (((1,), (1,)), ((), ())),
                            preferred_element_type=jnp.float32)
    o_ref[...] = o + b3_ref[...]


def _round_up(x, m):
    return ((x + m - 1) // m) * m


def _choose_row_tile(batch, feat_dim, row_tile, vmem_limit_bytes):
    """Lane-legal, VMEM-safe batch-row tile.

    * batch <= 128: one block covering the whole batch (block dims == array
      dims, always legal under the (8,128) rule).
    * otherwise: multiple of 128 (legal for the [tb, D] input block and the
      lane-dense [1, tb] output block), at least 2 grid steps so v7x can split
      rows across its two TensorCores, capped so double-buffered f32
      activations + (conservatively double-buffered) bf16 w1 + intermediates
      fit the scoped VMEM limit with headroom.
    """
    if batch <= 128:
        return batch
    headroom = 4 * 1024 * 1024                   # w2/w3/biases/compiler scratch
    w1_bytes = 2 * feat_dim * 512 * 2            # bf16 w1, assume double-buffered
    per_row = 2 * feat_dim * 4 + 6 * 512         # 2x f32 x-row + f32/bf16 h rows
    avail = vmem_limit_bytes - headroom - w1_bytes
    if avail > 128 * per_row:
        tb_vmem = max(128, (avail // per_row) // 128 * 128)
    else:
        tb_vmem = 128
    tile = min(row_tile, tb_vmem)
    n_steps = max(2, pl.cdiv(batch, tile))       # >=2 steps: v7x megacore split
    tb = _round_up(pl.cdiv(batch, n_steps), 128)
    return min(tb, tile)


def _const_spec(shape):
    """Constant-index block spec; single-buffered when the API allows it
    (weights are fetched once, so no double buffer -> half the VMEM)."""
    index_map = lambda i: (0,) * len(shape)
    try:
        return pl.BlockSpec(shape, index_map, pipeline_mode=pl.Buffered(1))
    except (AttributeError, TypeError, ValueError):
        return pl.BlockSpec(shape, index_map)


def discriminator_forward(img, params, *, matmul_dtype=jnp.bfloat16,
                          row_tile=1024,
                          vmem_limit_bytes=32 * 1024 * 1024):
    """img: [B, C, H, W] (NCHW, f32). Returns validity [B, 1] in f32."""
    B = img.shape[0]
    feat = img.reshape(B, -1)                     # == torch img.view(B, -1)
    D = feat.shape[1]
    H1 = params["w1"].shape[1]                    # 512
    H2 = params["w2"].shape[1]                    # 256

    # Casts below are trace-time no-ops when params were prepared once as bf16
    # (init_params); only fall back to casting if handed raw f32 params.
    def _as(p, dt):
        return p if p.dtype == dt else p.astype(dt)
    w1 = _as(params["w1"], matmul_dtype)
    w2 = _as(params["w2"], matmul_dtype)
    w3 = _as(params["w3"], matmul_dtype)
    b1 = _as(params["b1"], jnp.float32)
    b2 = _as(params["b2"], jnp.float32)
    b3 = _as(params["b3"], jnp.float32)

    tb = _choose_row_tile(B, D, row_tile, vmem_limit_bytes)
    grid = (pl.cdiv(B, tb),)

    out_row = pl.pallas_call(
        _discriminator_kernel,
        out_shape=jax.ShapeDtypeStruct((1, B), jnp.float32),
        grid=grid,
        in_specs=[
            pl.BlockSpec((tb, D), lambda i: (i, 0)),   # f32 rows; cast in-kernel
            _const_spec((D, H1)),                      # resident weights
            _const_spec((1, H1)),
            _const_spec((H1, H2)),
            _const_spec((1, H2)),
            _const_spec((1, H2)),                      # w3 stored lane-dense [1,256]
            _const_spec((1, 1)),
        ],
        out_specs=pl.BlockSpec((1, tb), lambda i: (0, i)),   # lane-dense row
        compiler_params=pltpu.CompilerParams(
            dimension_semantics=("parallel",),         # megacore / 2-TC sharding
            vmem_limit_bytes=vmem_limit_bytes,         # safe on v5e/v6e/v7x
        ),
    )(feat, w1, b1, w2, b2, w3, b3)
    return out_row.reshape(B, 1)


def discriminator_reference(img, params):
    """Pure-JAX reference (f32 math) matching the PyTorch module."""
    x = img.reshape(img.shape[0], -1).astype(jnp.float32)
    h = x @ params["w1"].astype(jnp.float32) + params["b1"].astype(jnp.float32)
    h = jnp.where(h >= 0, h, LRELU_SLOPE * h)
    h = h @ params["w2"].astype(jnp.float32) + params["b2"].astype(jnp.float32)
    h = jnp.where(h >= 0, h, LRELU_SLOPE * h)
    return h @ params["w3"].astype(jnp.float32).T + params["b3"].astype(jnp.float32)


def init_params(key, in_dim, *, matmul_dtype=jnp.bfloat16):
    """Synthetic params matching nn.Linear shapes, pre-cast ONCE for the kernel.

    Weights are stored [in, out] (transposed vs torch) and cast to bf16 here so
    the forward never re-casts per call; w3 is stored lane-dense as [1, 256].
    """
    dims = [(in_dim, 512), (512, 256), (256, 1)]
    keys = jax.random.split(key, 2 * len(dims))
    params = {}
    for idx, (fin, fout) in enumerate(dims, start=1):
        bound = 1.0 / (fin ** 0.5)                 # torch nn.Linear default range
        w = jax.random.uniform(keys[2 * (idx - 1)], (fin, fout), jnp.float32,
                               -bound, bound)
        b = jax.random.uniform(keys[2 * (idx - 1) + 1], (1, fout), jnp.float32,
                               -bound, bound)
        if fout == 1:
            params["w3"] = w.reshape(1, fin).astype(matmul_dtype)
            params["b3"] = b
        else:
            params[f"w{idx}"] = w.astype(matmul_dtype)
            params[f"b{idx}"] = b
    return params


if __name__ == "__main__":
    key = jax.random.PRNGKey(0)
    k_img, k_par, k_img2 = jax.random.split(key, 3)

    # Small shapes consistent with the module: D = C*H*W = 4*16*16 = 1024.
    batch, channels, img_size = 2, 4, 16
    D = channels * img_size * img_size
    params = init_params(k_par, D)

    fwd = jax.jit(discriminator_forward)

    img = jax.random.normal(k_img, (batch, channels, img_size, img_size),
                            jnp.float32)
    out = fwd(img, params)
    jax.block_until_ready(out)
    assert out.shape == (batch, 1) and out.dtype == jnp.float32, (out.shape, out.dtype)
    ref = discriminator_reference(img, params)
    err = float(jnp.max(jnp.abs(out - ref)))
    assert err < 5e-2, f"mismatch vs f32 reference: max abs err {err}"

    # Multi-step grid with a partial last tile (B % tb != 0): exercises the
    # megacore row split and masked partial-block output stores.
    batch2 = 200
    img2 = jax.random.normal(k_img2, (batch2, channels, img_size, img_size),
                             jnp.float32)
    out2 = fwd(img2, params)
    jax.block_until_ready(out2)
    assert out2.shape == (batch2, 1)
    ref2 = discriminator_reference(img2, params)
    err2 = float(jnp.max(jnp.abs(out2 - ref2)))
    assert err2 < 5e-2, f"mismatch on partial-tile batch: max abs err {err2}"

    print("KERNEL_OK")
</pallas_src>

<mosaic_0001>
module attributes {stable_mosaic.version = 11 : i64} {
  func.func @_discriminator_kernel(%arg0: i32, %arg1: memref<2x1024xf32, #tpu.memory_space<vmem>>, %arg2: memref<1024x512xbf16, #tpu.memory_space<vmem>>, %arg3: memref<1x512xf32, #tpu.memory_space<vmem>>, %arg4: memref<512x256xbf16, #tpu.memory_space<vmem>>, %arg5: memref<1x256xf32, #tpu.memory_space<vmem>>, %arg6: memref<1x256xbf16, #tpu.memory_space<vmem>>, %arg7: memref<1x1xf32, #tpu.memory_space<vmem>>, %arg8: memref<1x2xf32, #tpu.memory_space<vmem>>) attributes {dimension_semantics = [#tpu.dimension_semantics<parallel>], iteration_bounds = array<i64: 1>, scalar_prefetch = 0 : i64, scratch_operands = 0 : i64, tpu.core_type = #tpu.core_type<tc>, window_params = [{transform_indices = @transform_0, window_bounds = array<i64: 2, 1024>}, {pipeline_mode = #tpu.pipeline_mode<synchronous>, transform_indices = @transform_1, window_bounds = array<i64: 1024, 512>}, {pipeline_mode = #tpu.pipeline_mode<synchronous>, transform_indices = @transform_2, window_bounds = array<i64: 1, 512>}, {pipeline_mode = #tpu.pipeline_mode<synchronous>, transform_indices = @transform_3, window_bounds = array<i64: 512, 256>}, {pipeline_mode = #tpu.pipeline_mode<synchronous>, transform_indices = @transform_4, window_bounds = array<i64: 1, 256>}, {pipeline_mode = #tpu.pipeline_mode<synchronous>, transform_indices = @transform_5, window_bounds = array<i64: 1, 256>}, {pipeline_mode = #tpu.pipeline_mode<synchronous>, transform_indices = @transform_6, window_bounds = array<i64: 1, 1>}, {transform_indices = @transform_7, window_bounds = array<i64: 1, 2>}]} {
    %c0 = arith.constant 0 : index
    %c0_0 = arith.constant 0 : index
    %0 = vector.load %arg1[%c0, %c0_0] : memref<2x1024xf32, #tpu.memory_space<vmem>>, vector<2x1024xf32>
    %1 = arith.truncf %0 : vector<2x1024xf32> to vector<2x1024xbf16>
    %c0_1 = arith.constant 0 : index
    %c0_2 = arith.constant 0 : index
    %2 = vector.load %arg2[%c0_1, %c0_2] : memref<1024x512xbf16, #tpu.memory_space<vmem>>, vector<1024x512xbf16>
    %cst = arith.constant dense<0.000000e+00> : vector<2x512xf32>
    %3 = tpu.matmul %1, %2, %cst {dimension_numbers = #tpu.dot_dimension_numbers<[1], [0], [0], [1], [0, 0, 1, 1], [], []>} : vector<2x1024xbf16>, vector<1024x512xbf16>, vector<2x512xf32> -> vector<2x512xf32>
    %c0_3 = arith.constant 0 : index
    %c0_4 = arith.constant 0 : index
    %4 = vector.load %arg3[%c0_3, %c0_4] : memref<1x512xf32, #tpu.memory_space<vmem>>, vector<1x512xf32>
    %5 = vector.broadcast %4 : vector<1x512xf32> to vector<2x512xf32>
    %6 = arith.addf %3, %5 : vector<2x512xf32>
    %7 = arith.truncf %6 : vector<2x512xf32> to vector<2x512xbf16>
    %cst_5 = arith.constant 2.001950e-01 : bf16
    %8 = vector.broadcast %cst_5 : bf16 to vector<2x512xbf16>
    %9 = arith.mulf %8, %7 : vector<2x512xbf16>
    %10 = arith.maximumf %7, %9 : vector<2x512xbf16>
    %c0_6 = arith.constant 0 : index
    %c0_7 = arith.constant 0 : index
    %11 = vector.load %arg4[%c0_6, %c0_7] : memref<512x256xbf16, #tpu.memory_space<vmem>>, vector<512x256xbf16>
    %cst_8 = arith.constant dense<0.000000e+00> : vector<2x256xf32>
    %12 = tpu.matmul %10, %11, %cst_8 {dimension_numbers = #tpu.dot_dimension_numbers<[1], [0], [0], [1], [0, 0, 1, 1], [], []>} : vector<2x512xbf16>, vector<512x256xbf16>, vector<2x256xf32> -> vector<2x256xf32>
    %c0_9 = arith.constant 0 : index
    %c0_10 = arith.constant 0 : index
    %13 = vector.load %arg5[%c0_9, %c0_10] : memref<1x256xf32, #tpu.memory_space<vmem>>, vector<1x256xf32>
    %14 = vector.broadcast %13 : vector<1x256xf32> to vector<2x256xf32>
    %15 = arith.addf %12, %14 : vector<2x256xf32>
    %16 = arith.truncf %15 : vector<2x256xf32> to vector<2x256xbf16>
    %cst_11 = arith.constant 2.001950e-01 : bf16
    %17 = vector.broadcast %cst_11 : bf16 to vector<2x256xbf16>
    %18 = arith.mulf %17, %16 : vector<2x256xbf16>
    %19 = arith.maximumf %16, %18 : vector<2x256xbf16>
    %c0_12 = arith.constant 0 : index
    %c0_13 = arith.constant 0 : index
    %20 = vector.load %arg6[%c0_12, %c0_13] : memref<1x256xbf16, #tpu.memory_space<vmem>>, vector<1x256xbf16>
    %cst_14 = arith.constant dense<0.000000e+00> : vector<1x2xf32>
    %21 = tpu.matmul %20, %19, %cst_14 {dimension_numbers = #tpu.dot_dimension_numbers<[1], [1], [0], [0], [0, 0, 1, 0], [], []>} : vector<1x256xbf16>, vector<2x256xbf16>, vector<1x2xf32> -> vector<1x2xf32>
    %c0_15 = arith.constant 0 : index
    %c0_16 = arith.constant 0 : index
    %22 = vector.load %arg7[%c0_15, %c0_16] : memref<1x1xf32, #tpu.memory_space<vmem>>, vector<1x1xf32>
    %23 = vector.broadcast %22 : vector<1x1xf32> to vector<1x2xf32>
    %24 = arith.addf %21, %23 : vector<1x2xf32>
    %c0_17 = arith.constant 0 : index
    %c0_18 = arith.constant 0 : index
    %25 = vector.load %arg8[%c0_17, %c0_18] : memref<1x2xf32, #tpu.memory_space<vmem>>, vector<1x2xf32>
    tpu.vector_store %arg8[%c0_17, %c0_18], %24 {strides = array<i32>} : memref<1x2xf32, #tpu.memory_space<vmem>>, vector<1x2xf32>,
    return
  }
  func.func @transform_0(%arg0: i32) -> (i32, i32) {
    %c0_i32 = arith.constant 0 : i32
    %c0_i32_0 = arith.constant 0 : i32
    return %arg0, %c0_i32 : i32, i32
  }
  func.func @transform_1(%arg0: i32) -> (i32, i32) {
    %c0_i32 = arith.constant 0 : i32
    %c0_i32_0 = arith.constant 0 : i32
    %c0_i32_1 = arith.constant 0 : i32
    return %c0_i32, %c0_i32_0 : i32, i32
  }
  func.func @transform_2(%arg0: i32) -> (i32, i32) {
    %c0_i32 = arith.constant 0 : i32
    %c0_i32_0 = arith.constant 0 : i32
    %c0_i32_1 = arith.constant 0 : i32
    return %c0_i32, %c0_i32_0 : i32, i32
  }
  func.func @transform_3(%arg0: i32) -> (i32, i32) {
    %c0_i32 = arith.constant 0 : i32
    %c0_i32_0 = arith.constant 0 : i32
    %c0_i32_1 = arith.constant 0 : i32
    return %c0_i32, %c0_i32_0 : i32, i32
  }
  func.func @transform_4(%arg0: i32) -> (i32, i32) {
    %c0_i32 = arith.constant 0 : i32
    %c0_i32_0 = arith.constant 0 : i32
    %c0_i32_1 = arith.constant 0 : i32
    return %c0_i32, %c0_i32_0 : i32, i32
  }
  func.func @transform_5(%arg0: i32) -> (i32, i32) {
    %c0_i32 = arith.constant 0 : i32
    %c0_i32_0 = arith.constant 0 : i32
    %c0_i32_1 = arith.constant 0 : i32
    return %c0_i32, %c0_i32_0 : i32, i32
  }
  func.func @transform_6(%arg0: i32) -> (i32, i32) {
    %c0_i32 = arith.constant 0 : i32
    %c0_i32_0 = arith.constant 0 : i32
    %c0_i32_1 = arith.constant 0 : i32
    return %c0_i32, %c0_i32_0 : i32, i32
  }
  func.func @transform_7(%arg0: i32) -> (i32, i32) {
    %c0_i32 = arith.constant 0 : i32
    %c0_i32_0 = arith.constant 0 : i32
    return %c0_i32, %arg0 : i32, i32
  }
}

</mosaic_0001>

<llo_original>
// kernel: discriminator_forward.1
$region0: #{discriminator_forward.1}
  #allocation0 [shape = 'u32[]', space=smem, size = 0x4, offset = 0x4, fixed_abs, tag = 'smem constant byte address 0x4 - core index']
  #allocation1 [shape = 'u32[144,128]{1,0:T(1,128)}', space=vmem, size = 0x12000, scoped, tag = 'internal scratch']
  #allocation2 [shape = 'f32[1,1]{1,0:T(1,128)S(1)}', space=vmem, size = 0x200, scoped, tag = 'scoped memory for discriminator_forward.1']
  %s0 = inlined_call_operand.vmem [shape: f32[2,1024], index: 0, kind: input, shape index: {}]
  %s1 = inlined_call_operand.hbm [shape: bf16[1024,512], index: 1, kind: input, shape index: {}]
  %s2 = inlined_call_operand.vmem [shape: f32[1,512], index: 2, kind: input, shape index: {}]
  %s3 = inlined_call_operand.hbm [shape: bf16[512,256], index: 3, kind: input, shape index: {}]
  %s4 = inlined_call_operand.vmem [shape: f32[1,256], index: 4, kind: input, shape index: {}]
  %s5 = inlined_call_operand.vmem [shape: bf16[1,256], index: 5, kind: input, shape index: {}]
  %s6 = inlined_call_operand.<no memory space> [shape: f32[1,1], index: 6, kind: input, shape index: {}]
  %s7 = inlined_call_operand.hbm [shape: f32[1,2], index: 7, kind: output, shape index: {}]
  %s8 = sld [smem:[#allocation0]]
  $region46: #{discriminator_forward.1} parent=0
    _
  %s10 = ssub.s32 1, %s8
  %s11 = scalar_select 0, %s10, %s8
  %v12 = vstv %s6
  %13 = vst [vmem:[#allocation2] sm:$0x1] %v12
  $region1: #{discriminator_forward.1} parent=0
    #allocation3 [shape = 'u8[1048576]{0}', space=vmem, size = 0x100000, scoped, tag = 'input window, operand 1, single buffered']
    #allocation4 [shape = 's32[1]{0}', space=sflag, size = 0x4, scoped, tag = 'scoped memory for discriminator_forward.1']
    #allocation5 [shape = 's32[1]{0}', space=sflag, size = 0x4, scoped, tag = 'scoped memory for discriminator_forward.1']
    #allocation6 [shape = 'u8[262144]{0}', space=vmem, size = 0x40000, scoped, tag = 'input window, operand 3, single buffered']
    #allocation7 [shape = 's32[1]{0}', space=sflag, size = 0x4, scoped, tag = 'scoped memory for discriminator_forward.1']
    #allocation8 [shape = 'u8[512]{0}', space=vmem, size = 0x400, scoped, tag = 'output window, operand 0, single buffered']
    %14 = vsyncpa [#allocation4], 0
    %15 = vsyncpa [#allocation7], 0
    %16 = vsyncpa [#allocation5], 0
    // Predicated region
    $region2: #{discriminator_forward.1} parent=1 // pred_check
      _
    $region3: #{discriminator_forward.1} parent=1 // pred_check_branch
      %18 = sbr.rel (0) target = $region5
    $region4: #{discriminator_forward.1} parent=1 // pred_region
      _
    $region5: #{discriminator_forward.1} parent=1 // pred_fallthru
      _
    // Predicated region
    $region6: #{discriminator_forward.1} parent=1 // pred_check
      _
    $region7: #{discriminator_forward.1} parent=1 // pred_check_branch
      %20 = sbr.rel (0) target = $region9
    $region8: #{discriminator_forward.1} parent=1 // pred_region
      %s22 = ssub.s32 32768, 32768
      %23 = vsyncadd [#allocation4], %s22
      %s24 = sshll.u32 [#allocation3], 4
      %s25 = int_to_ptr.vmem [resolvable:$true] %s24
      %30 = dma.hbm_to_vmem [thread:$0]  %s1, 32768, %s25, [#allocation4], 256, 256, 16
    $region9: #{discriminator_forward.1} parent=1 // pred_fallthru
      _
    // Predicated region
    $region10: #{discriminator_forward.1} parent=1 // pred_check
      _
    $region11: #{discriminator_forward.1} parent=1 // pred_check_branch
      %32 = sbr.rel (0) target = $region13
    $region12: #{discriminator_forward.1} parent=1 // pred_region
      _
    $region13: #{discriminator_forward.1} parent=1 // pred_fallthru
      _
    // Predicated region
    $region14: #{discriminator_forward.1} parent=1 // pred_check
      _
    $region15: #{discriminator_forward.1} parent=1 // pred_check_branch
      %34 = sbr.rel (0) target = $region17
    $region16: #{discriminator_forward.1} parent=1 // pred_region
      %s36 = ssub.s32 8192, 8192
      %37 = vsyncadd [#allocation7], %s36
      %s38 = sshll.u32 [#allocation6], 4
      %s39 = int_to_ptr.vmem [resolvable:$true] %s38
      %44 = dma.hbm_to_vmem [thread:$0]  %s3, 8192, %s39, [#allocation7], 128, 128, 8
    $region17: #{discriminator_forward.1} parent=1 // pred_fallthru
      _
    // Predicated region
    $region18: #{discriminator_forward.1} parent=1 // pred_check
      _
    $region19: #{discriminator_forward.1} parent=1 // pred_check_branch
      %46 = sbr.rel (0) target = $region21
    $region20: #{discriminator_forward.1} parent=1 // pred_region
      _
    $region21: #{discriminator_forward.1} parent=1 // pred_fallthru
      _
    // Predicated region
    $region22: #{discriminator_forward.1} parent=1 // pred_check
      _
    $region23: #{discriminator_forward.1} parent=1 // pred_check_branch
      %48 = sbr.rel (0) target = $region25
    $region24: #{discriminator_forward.1} parent=1 // pred_region
      _
    $region25: #{discriminator_forward.1} parent=1 // pred_fallthru
      _
    // Predicated region
    $region26: #{discriminator_forward.1} parent=1 // pred_check
      _
    $region27: #{discriminator_forward.1} parent=1 // pred_check_branch
      %50 = sbr.rel (0) target = $region29
    $region28: #{discriminator_forward.1} parent=1 // pred_region
      _
    $region29: #{discriminator_forward.1} parent=1 // pred_fallthru
      _
    // Predicated region
    $region30: #{discriminator_forward.1} parent=1 // pred_check
      _
    $region31: #{discriminator_forward.1} parent=1 // pred_check_branch
      %52 = sbr.rel (0) target = $region33
    $region32: #{discriminator_forward.1} parent=1 // pred_region
      %53 = dma.done [#allocation4], 32768
    $region33: #{discriminator_forward.1} parent=1 // pred_fallthru
      _
    // Predicated region
    $region34: #{discriminator_forward.1} parent=1 // pred_check
      _
    $region35: #{discriminator_forward.1} parent=1 // pred_check_branch
      %55 = sbr.rel (0) target = $region37
    $region36: #{discriminator_forward.1} parent=1 // pred_region
      %56 = dma.done [#allocation7], 8192
    $region37: #{discriminator_forward.1} parent=1 // pred_fallthru
      _
    %v59 = vld [vmem:[%s0] sm:$0xff]
    %v60 = vld [vmem:[%s0 + $0x8] sm:$0xff]
    %v63 = vcombine.high %v59, %v59
    %v65 = vunpack.c.l.s4 1983009808
    %v66 = vunpack.c.0.s8 %v65
    %v67 = vlaneseq
    %v68 = vshrl.u32 %v67, 7
    %v69 = vsub.s32 %v66, %v68
    %v70 = vrot.slane %v59, %v69
    %v72 = vunpack.c.l.s4 1983009808
    %v73 = vunpack.c.0.s8 %v72
    %v74 = vlaneseq
    %v75 = vshrl.u32 %v74, 7
    %v76 = vsub.s32 %v73, %v75
    %v77 = vrot.slane %v63, %v76
    %v78 = vcombine.high %v70, %v70
    %v79 = vcombine.high %v77, %v77
    %v80 = vcombine.high %v60, %v60
    %v82 = vunpack.c.l.s4 1983009808
    %v83 = vunpack.c.0.s8 %v82
    %v84 = vlaneseq
    %v85 = vshrl.u32 %v84, 7
    %v86 = vsub.s32 %v83, %v85
    %v87 = vrot.slane %v60, %v86
    %v89 = vunpack.c.l.s4 1983009808
    %v90 = vunpack.c.0.s8 %v89
    %v91 = vlaneseq
    %v92 = vshrl.u32 %v91, 7
    %v93 = vsub.s32 %v90, %v92
    %v94 = vrot.slane %v80, %v93
    %v95 = vcombine.high %v87, %v87
    %v96 = vcombine.high %v94, %v94
    %v105 = vpack.c.bf16 %v70, %v70
    %v106 = vpack.c.bf16 %v78, %v78
    %v107 = vpack.c.bf16 %v77, %v77
    %v108 = vpack.c.bf16 %v79, %v79
    %v109 = vpack.c.bf16 %v87, %v87
    %v110 = vpack.c.bf16 %v95, %v95
    %v111 = vpack.c.bf16 %v94, %v94
    %v112 = vpack.c.bf16 %v96, %v96
    %v113 = vld [vmem:[#allocation3] sm:$0xff]
    %v114 = vld [vmem:[#allocation3 + $0x8] sm:$0xff]
    %v115 = vld [vmem:[#allocation3 + $0x10] sm:$0xff]
    %v116 = vld [vmem:[#allocation3 + $0x18] sm:$0xff]
    %v117 = vld [vmem:[#allocation3 + $0x20] sm:$0xff]
    %v118 = vld [vmem:[#allocation3 + $0x28] sm:$0xff]
    %v119 = vld [vmem:[#allocation3 + $0x30] sm:$0xff]
    %v120 = vld [vmem:[#allocation3 + $0x38] sm:$0xff]
    %v121 = vld [vmem:[#allocation3 + $0x40] sm:$0xff]
    %v122 = vld [vmem:[#allocation3 + $0x48] sm:$0xff]
    %v123 = vld [vmem:[#allocation3 + $0x50] sm:$0xff]
    %v124 = vld [vmem:[#allocation3 + $0x58] sm:$0xff]
    %v125 = vld [vmem:[#allocation3 + $0x60] sm:$0xff]
    %v126 = vld [vmem:[#allocation3 + $0x68] sm:$0xff]
    %v127 = vld [vmem:[#allocation3 + $0x70] sm:$0xff]
    %v128 = vld [vmem:[#allocation3 + $0x78] sm:$0xff]
    %v129 = vld [vmem:[#allocation3 + $0x80] sm:$0xff]
    %v130 = vld [vmem:[#allocation3 + $0x88] sm:$0xff]
    %v131 = vld [vmem:[#allocation3 + $0x90] sm:$0xff]
    %v132 = vld [vmem:[#allocation3 + $0x98] sm:$0xff]
    %v133 = vld [vmem:[#allocation3 + $0xa0] sm:$0xff]
    %v134 = vld [vmem:[#allocation3 + $0xa8] sm:$0xff]
    %v135 = vld [vmem:[#allocation3 + $0xb0] sm:$0xff]
    %v136 = vld [vmem:[#allocation3 + $0xb8] sm:$0xff]
    %v137 = vld [vmem:[#allocation3 + $0xc0] sm:$0xff]
    %v138 = vld [vmem:[#allocation3 + $0xc8] sm:$0xff]
    %v139 = vld [vmem:[#allocation3 + $0xd0] sm:$0xff]
    %v140 = vld [vmem:[#allocation3 + $0xd8] sm:$0xff]
    %v141 = vld [vmem:[#allocation3 + $0xe0] sm:$0xff]
    %v142 = vld [vmem:[#allocation3 + $0xe8] sm:$0xff]
    %v143 = vld [vmem:[#allocation3 + $0xf0] sm:$0xff]
    %v144 = vld [vmem:[#allocation3 + $0xf8] sm:$0xff]
    %v145 = vld [vmem:[#allocation3 + $0x100] sm:$0xff]
    %v146 = vld [vmem:[#allocation3 + $0x108] sm:$0xff]
    %v147 = vld [vmem:[#allocation3 + $0x110] sm:$0xff]
    %v148 = vld [vmem:[#allocation3 + $0x118] sm:$0xff]
    %v149 = vld [vmem:[#allocation3 + $0x120] sm:$0xff]
    %v150 = vld [vmem:[#allocation3 + $0x128] sm:$0xff]
    %v151 = vld [vmem:[#allocation3 + $0x130] sm:$0xff]
    %v152 = vld [vmem:[#allocation3 + $0x138] sm:$0xff]
    %v153 = vld [vmem:[#allocation3 + $0x140] sm:$0xff]
    %v154 = vld [vmem:[#allocation3 + $0x148] sm:$0xff]
    %v155 = vld [vmem:[#allocation3 + $0x150] sm:$0xff]
    %v156 = vld [vmem:[#allocation3 + $0x158] sm:$0xff]
    %v157 = vld [vmem:[#allocation3 + $0x160] sm:$0xff]
    %v158 = vld [vmem:[#allocation3 + $0x168] sm:$0xff]
    %v159 = vld [vmem:[#allocation3 + $0x170] sm:$0xff]
    %v160 = vld [vmem:[#allocation3 + $0x178] sm:$0xff]
    %v161 = vld [vmem:[#allocation3 + $0x180] sm:$0xff]
    %v162 = vld [vmem:[#allocation3 + $0x188] sm:$0xff]
    %v163 = vld [vmem:[#allocation3 + $0x190] sm:$0xff]
    %v164 = vld [vmem:[#allocation3 + $0x198] sm:$0xff]
    %v165 = vld [vmem:[#allocation3 + $0x1a0] sm:$0xff]
    %v166 = vld [vmem:[#allocation3 + $0x1a8] sm:$0xff]
    %v167 = vld [vmem:[#allocation3 + $0x1b0] sm:$0xff]
    %v168 = vld [vmem:[#allocation3 + $0x1b8] sm:$0xff]
    %v169 = vld [vmem:[#allocation3 + $0x1c0] sm:$0xff]
    %v170 = vld [vmem:[#allocation3 + $0x1c8] sm:$0xff]
    %v171 = vld [vmem:[#allocation3 + $0x1d0] sm:$0xff]
    %v172 = vld [vmem:[#allocation3 + $0x1d8] sm:$0xff]
    %v173 = vld [vmem:[#allocation3 + $0x1e0] sm:$0xff]
    %v174 = vld [vmem:[#allocation3 + $0x1e8] sm:$0xff]
    %v175 = vld [vmem:[#allocation3 + $0x1f0] sm:$0xff]
    %v176 = vld [vmem:[#allocation3 + $0x1f8] sm:$0xff]
    %v177 = vld [vmem:[#allocation3 + $0x200] sm:$0xff]
    %v178 = vld [vmem:[#allocation3 + $0x208] sm:$0xff]
    %v179 = vld [vmem:[#allocation3 + $0x210] sm:$0xff]
    %v180 = vld [vmem:[#allocation3 + $0x218] sm:$0xff]
    %v181 = vld [vmem:[#allocation3 + $0x220] sm:$0xff]
    %v182 = vld [vmem:[#allocation3 + $0x228] sm:$0xff]
    %v183 = vld [vmem:[#allocation3 + $0x230] sm:$0xff]
    %v184 = vld [vmem:[#allocation3 + $0x238] sm:$0xff]
    %v185 = vld [vmem:[#allocation3 + $0x240] sm:$0xff]
    %v186 = vld [vmem:[#allocation3 + $0x248] sm:$0xff]
    %v187 = vld [vmem:[#allocation3 + $0x250] sm:$0xff]
    %v188 = vld [vmem:[#allocation3 + $0x258] sm:$0xff]
    %v189 = vld [vmem:[#allocation3 + $0x260] sm:$0xff]
    %v190 = vld [vmem:[#allocation3 + $0x268] sm:$0xff]
    %v191 = vld [vmem:[#allocation3 + $0x270] sm:$0xff]
    %v192 = vld [vmem:[#allocation3 + $0x278] sm:$0xff]
    %v193 = vld [vmem:[#allocation3 + $0x280] sm:$0xff]
    %v194 = vld [vmem:[#allocation3 + $0x288] sm:$0xff]
    %v195 = vld [vmem:[#allocation3 + $0x290] sm:$0xff]
    %v196 = vld [vmem:[#allocation3 + $0x298] sm:$0xff]
    %v197 = vld [vmem:[#allocation3 + $0x2a0] sm:$0xff]
    %v198 = vld [vmem:[#allocation3 + $0x2a8] sm:$0xff]
    %v199 = vld [vmem:[#allocation3 + $0x2b0] sm:$0xff]
    %v200 = vld [vmem:[#allocation3 + $0x2b8] sm:$0xff]
    %v201 = vld [vmem:[#allocation3 + $0x2c0] sm:$0xff]
    %v202 = vld [vmem:[#allocation3 + $0x2c8] sm:$0xff]
    %v203 = vld [vmem:[#allocation3 + $0x2d0] sm:$0xff]
    %v204 = vld [vmem:[#allocation3 + $0x2d8] sm:$0xff]
    %v205 = vld [vmem:[#allocation3 + $0x2e0] sm:$0xff]
    %v206 = vld [vmem:[#allocation3 + $0x2e8] sm:$0xff]
    %v207 = vld [vmem:[#allocation3 + $0x2f0] sm:$0xff]
    %v208 = vld [vmem:[#allocation3 + $0x2f8] sm:$0xff]
    %v209 = vld [vmem:[#allocation3 + $0x300] sm:$0xff]
    %v210 = vld [vmem:[#allocation3 + $0x308] sm:$0xff]
    %v211 = vld [vmem:[#allocation3 + $0x310] sm:$0xff]
    %v212 = vld [vmem:[#allocation3 + $0x318] sm:$0xff]
    %v213 = vld [vmem:[#allocation3 + $0x320] sm:$0xff]
    %v214 = vld [vmem:[#allocation3 + $0x328] sm:$0xff]
    %v215 = vld [vmem:[#allocation3 + $0x330] sm:$0xff]
    %v216 = vld [vmem:[#allocation3 + $0x338] sm:$0xff]
    %v217 = vld [vmem:[#allocation3 + $0x340] sm:$0xff]
    %v218 = vld [vmem:[#allocation3 + $0x348] sm:$0xff]
    %v219 = vld [vmem:[#allocation3 + $0x350] sm:$0xff]
    %v220 = vld [vmem:[#allocation3 + $0x358] sm:$0xff]
    %v221 = vld [vmem:[#allocation3 + $0x360] sm:$0xff]
    %v222 = vld [vmem:[#allocation3 + $0x368] sm:$0xff]
    %v223 = vld [vmem:[#allocation3 + $0x370] sm:$0xff]
    %v224 = vld [vmem:[#allocation3 + $0x378] sm:$0xff]
    %v225 = vld [vmem:[#allocation3 + $0x380] sm:$0xff]
    %v226 = vld [vmem:[#allocation3 + $0x388] sm:$0xff]
    %v227 = vld [vmem:[#allocation3 + $0x390] sm:$0xff]
    %v228 = vld [vmem:[#allocation3 + $0x398] sm:$0xff]
    %v229 = vld [vmem:[#allocation3 + $0x3a0] sm:$0xff]
    %v230 = vld [vmem:[#allocation3 + $0x3a8] sm:$0xff]
    %v231 = vld [vmem:[#allocation3 + $0x3b0] sm:$0xff]
    %v232 = vld [vmem:[#allocation3 + $0x3b8] sm:$0xff]
    %v233 = vld [vmem:[#allocation3 + $0x3c0] sm:$0xff]
    %v234 = vld [vmem:[#allocation3 + $0x3c8] sm:$0xff]
    %v235 = vld [vmem:[#allocation3 + $0x3d0] sm:$0xff]
    %v236 = vld [vmem:[#allocation3 + $0x3d8] sm:$0xff]
    %v237 = vld [vmem:[#allocation3 + $0x3e0] sm:$0xff]
    %v238 = vld [vmem:[#allocation3 + $0x3e8] sm:$0xff]
    %v239 = vld [vmem:[#allocation3 + $0x3f0] sm:$0xff]
    %v240 = vld [vmem:[#allocation3 + $0x3f8] sm:$0xff]
    %v241 = vld [vmem:[#allocation3 + $0x400] sm:$0xff]
    %v242 = vld [vmem:[#allocation3 + $0x408] sm:$0xff]
    %v243 = vld [vmem:[#allocation3 + $0x410] sm:$0xff]
    %v244 = vld [vmem:[#allocation3 + $0x418] sm:$0xff]
    %v245 = vld [vmem:[#allocation3 + $0x420] sm:$0xff]
    %v246 = vld [vmem:[#allocation3 + $0x428] sm:$0xff]
    %v247 = vld [vmem:[#allocation3 + $0x430] sm:$0xff]
    %v248 = vld [vmem:[#allocation3 + $0x438] sm:$0xff]
    %v249 = vld [vmem:[#allocation3 + $0x440] sm:$0xff]
    %v250 = vld [vmem:[#allocation3 + $0x448] sm:$0xff]
    %v251 = vld [vmem:[#allocation3 + $0x450] sm:$0xff]
    %v252 = vld [vmem:[#allocation3 + $0x458] sm:$0xff]
    %v253 = vld [vmem:[#allocation3 + $0x460] sm:$0xff]
    %v254 = vld [vmem:[#allocation3 + $0x468] sm:$0xff]
    %v255 = vld [vmem:[#allocation3 + $0x470] sm:$0xff]
    %v256 = vld [vmem:[#allocation3 + $0x478] sm:$0xff]
    %v257 = vld [vmem:[#allocation3 + $0x480] sm:$0xff]
    %v258 = vld [vmem:[#allocation3 + $0x488] sm:$0xff]
    %v259 = vld [vmem:[#allocation3 + $0x490] sm:$0xff]
    %v260 = vld [vmem:[#allocation3 + $0x498] sm:$0xff]
    %v261 = vld [vmem:[#allocation3 + $0x4a0] sm:$0xff]
    %v262 = vld [vmem:[#allocation3 + $0x4a8] sm:$0xff]
    %v263 = vld [vmem:[#allocation3 + $0x4b0] sm:$0xff]
    %v264 = vld [vmem:[#allocation3 + $0x4b8] sm:$0xff]
    %v265 = vld [vmem:[#allocation3 + $0x4c0] sm:$0xff]
    %v266 = vld [vmem:[#allocation3 + $0x4c8] sm:$0xff]
    %v267 = vld [vmem:[#allocation3 + $0x4d0] sm:$0xff]
    %v268 = vld [vmem:[#allocation3 + $0x4d8] sm:$0xff]
    %v269 = vld [vmem:[#allocation3 + $0x4e0] sm:$0xff]
    %v270 = vld [vmem:[#allocation3 + $0x4e8] sm:$0xff]
    %v271 = vld [vmem:[#allocation3 + $0x4f0] sm:$0xff]
    %v272 = vld [vmem:[#allocation3 + $0x4f8] sm:$0xff]
    %v273 = vld [vmem:[#allocation3 + $0x500] sm:$0xff]
    %v274 = vld [vmem:[#allocation3 + $0x508] sm:$0xff]
    %v275 = vld [vmem:[#allocation3 + $0x510] sm:$0xff]
    %v276 = vld [vmem:[#allocation3 + $0x518] sm:$0xff]
    %v277 = vld [vmem:[#allocation3 + $0x520] sm:$0xff]
    %v278 = vld [vmem:[#allocation3 + $0x528] sm:$0xff]
    %v279 = vld [vmem:[#allocation3 + $0x530] sm:$0xff]
    %v280 = vld [vmem:[#allocation3 + $0x538] sm:$0xff]
    %v281 = vld [vmem:[#allocation3 + $0x540] sm:$0xff]
    %v282 = vld [vmem:[#allocation3 + $0x548] sm:$0xff]
    %v283 = vld [vmem:[#allocation3 + $0x550] sm:$0xff]
    %v284 = vld [vmem:[#allocation3 + $0x558] sm:$0xff]
    %v285 = vld [vmem:[#allocation3 + $0x560] sm:$0xff]
    %v286 = vld [vmem:[#allocation3 + $0x568] sm:$0xff]
    %v287 = vld [vmem:[#allocation3 + $0x570] sm:$0xff]
    %v288 = vld [vmem:[#allocation3 + $0x578] sm:$0xff]
    %v289 = vld [vmem:[#allocation3 + $0x580] sm:$0xff]
    %v290 = vld [vmem:[#allocation3 + $0x588] sm:$0xff]
    %v291 = vld [vmem:[#allocation3 + $0x590] sm:$0xff]
    %v292 = vld [vmem:[#allocation3 + $0x598] sm:$0xff]
    %v293 = vld [vmem:[#allocation3 + $0x5a0] sm:$0xff]
    %v294 = vld [vmem:[#allocation3 + $0x5a8] sm:$0xff]
    %v295 = vld [vmem:[#allocation3 + $0x5b0] sm:$0xff]
    %v296 = vld [vmem:[#allocation3 + $0x5b8] sm:$0xff]
    %v297 = vld [vmem:[#allocation3 + $0x5c0] sm:$0xff]
    %v298 = vld [vmem:[#allocation3 + $0x5c8] sm:$0xff]
    %v299 = vld [vmem:[#allocation3 + $0x5d0] sm:$0xff]
    %v300 = vld [vmem:[#allocation3 + $0x5d8] sm:$0xff]
    %v301 = vld [vmem:[#allocation3 + $0x5e0] sm:$0xff]
    %v302 = vld [vmem:[#allocation3 + $0x5e8] sm:$0xff]
    %v303 = vld [vmem:[#allocation3 + $0x5f0] sm:$0xff]
    %v304 = vld [vmem:[#allocation3 + $0x5f8] sm:$0xff]
    %v305 = vld [vmem:[#allocation3 + $0x600] sm:$0xff]
    %v306 = vld [vmem:[#allocation3 + $0x608] sm:$0xff]
    %v307 = vld [vmem:[#allocation3 + $0x610] sm:$0xff]
    %v308 = vld [vmem:[#allocation3 + $0x618] sm:$0xff]
    %v309 = vld [vmem:[#allocation3 + $0x620] sm:$0xff]
    %v310 = vld [vmem:[#allocation3 + $0x628] sm:$0xff]
    %v311 = vld [vmem:[#allocation3 + $0x630] sm:$0xff]
    %v312 = vld [vmem:[#allocation3 + $0x638] sm:$0xff]
    %v313 = vld [vmem:[#allocation3 + $0x640] sm:$0xff]
    %v314 = vld [vmem:[#allocation3 + $0x648] sm:$0xff]
    %v315 = vld [vmem:[#allocation3 + $0x650] sm:$0xff]
    %v316 = vld [vmem:[#allocation3 + $0x658] sm:$0xff]
    %v317 = vld [vmem:[#allocation3 + $0x660] sm:$0xff]
    %v318 = vld [vmem:[#allocation3 + $0x668] sm:$0xff]
    %v319 = vld [vmem:[#allocation3 + $0x670] sm:$0xff]
    %v320 = vld [vmem:[#allocation3 + $0x678] sm:$0xff]
    %v321 = vld [vmem:[#allocation3 + $0x680] sm:$0xff]
    %v322 = vld [vmem:[#allocation3 + $0x688] sm:$0xff]
    %v323 = vld [vmem:[#allocation3 + $0x690] sm:$0xff]
    %v324 = vld [vmem:[#allocation3 + $0x698] sm:$0xff]
    %v325 = vld [vmem:[#allocation3 + $0x6a0] sm:$0xff]
    %v326 = vld [vmem:[#allocation3 + $0x6a8] sm:$0xff]
    %v327 = vld [vmem:[#allocation3 + $0x6b0] sm:$0xff]
    %v328 = vld [vmem:[#allocation3 + $0x6b8] sm:$0xff]
    %v329 = vld [vmem:[#allocation3 + $0x6c0] sm:$0xff]
    %v330 = vld [vmem:[#allocation3 + $0x6c8] sm:$0xff]
    %v331 = vld [vmem:[#allocation3 + $0x6d0] sm:$0xff]
    %v332 = vld [vmem:[#allocation3 + $0x6d8] sm:$0xff]
    %v333 = vld [vmem:[#allocation3 + $0x6e0] sm:$0xff]
    %v334 = vld [vmem:[#allocation3 + $0x6e8] sm:$0xff]
    %v335 = vld [vmem:[#allocation3 + $0x6f0] sm:$0xff]
    %v336 = vld [vmem:[#allocation3 + $0x6f8] sm:$0xff]
    %v337 = vld [vmem:[#allocation3 + $0x700] sm:$0xff]
    %v338 = vld [vmem:[#allocation3 + $0x708] sm:$0xff]
    %v339 = vld [vmem:[#allocation3 + $0x710] sm:$0xff]
    %v340 = vld [vmem:[#allocation3 + $0x718] sm:$0xff]
    %v341 = vld [vmem:[#allocation3 + $0x720] sm:$0xff]
    %v342 = vld [vmem:[#allocation3 + $0x728] sm:$0xff]
    %v343 = vld [vmem:[#allocation3 + $0x730] sm:$0xff]
    %v344 = vld [vmem:[#allocation3 + $0x738] sm:$0xff]
    %v345 = vld [vmem:[#allocation3 + $0x740] sm:$0xff]
    %v346 = vld [vmem:[#allocation3 + $0x748] sm:$0xff]
    %v347 = vld [vmem:[#allocation3 + $0x750] sm:$0xff]
    %v348 = vld [vmem:[#allocation3 + $0x758] sm:$0xff]
    %v349 = vld [vmem:[#allocation3 + $0x760] sm:$0xff]
    %v350 = vld [vmem:[#allocation3 + $0x768] sm:$0xff]
    %v351 = vld [vmem:[#allocation3 + $0x770] sm:$0xff]
    %v352 = vld [vmem:[#allocation3 + $0x778] sm:$0xff]
    %v353 = vld [vmem:[#allocation3 + $0x780] sm:$0xff]
    %v354 = vld [vmem:[#allocation3 + $0x788] sm:$0xff]
    %v355 = vld [vmem:[#allocation3 + $0x790] sm:$0xff]
    %v356 = vld [vmem:[#allocation3 + $0x798] sm:$0xff]
    %v357 = vld [vmem:[#allocation3 + $0x7a0] sm:$0xff]
    %v358 = vld [vmem:[#allocation3 + $0x7a8] sm:$0xff]
    %v359 = vld [vmem:[#allocation3 + $0x7b0] sm:$0xff]
    %v360 = vld [vmem:[#allocation3 + $0x7b8] sm:$0xff]
    %v361 = vld [vmem:[#allocation3 + $0x7c0] sm:$0xff]
    %v362 = vld [vmem:[#allocation3 + $0x7c8] sm:$0xff]
    %v363 = vld [vmem:[#allocation3 + $0x7d0] sm:$0xff]
    %v364 = vld [vmem:[#allocation3 + $0x7d8] sm:$0xff]
    %v365 = vld [vmem:[#allocation3 + $0x7e0] sm:$0xff]
    %v366 = vld [vmem:[#allocation3 + $0x7e8] sm:$0xff]
    %v367 = vld [vmem:[#allocation3 + $0x7f0] sm:$0xff]
    %v368 = vld [vmem:[#allocation3 + $0x7f8] sm:$0xff]
    %v369 = vld [vmem:[%s2] sm:$0xf]
    %v371 = vlaneseq
    %v372 = vshrl.u32 %v371, 7
    %v373 = vsub.s32 0, %v372
    %v374 = vrot.slane %v369, %v373
    %v375 = vlaneseq
    %v376 = vshrl.u32 %v375, 7
    %v377 = vsub.s32 1, %v376
    %v378 = vrot.slane %v369, %v377
    %v379 = vlaneseq
    %v380 = vshrl.u32 %v379, 7
    %v381 = vsub.s32 2, %v380
    %v382 = vrot.slane %v369, %v381
    %v383 = vlaneseq
    %v384 = vshrl.u32 %v383, 7
    %v385 = vsub.s32 3, %v384
    %v386 = vrot.slane %v369, %v385
    %v647 = vunpack.c.l.b16 %v113
    %v648 = vunpack.c.h.b16 %v113
    %v649 = vunpack.c.l.b16 %v114
    %v650 = vunpack.c.h.b16 %v114
    %v651 = vunpack.c.l.b16 %v115
    %v652 = vunpack.c.h.b16 %v115
    %v653 = vunpack.c.l.b16 %v116
    %v654 = vunpack.c.h.b16 %v116
    %v655 = vunpack.c.l.b16 %v117
    %v656 = vunpack.c.h.b16 %v117
    %v657 = vunpack.c.l.b16 %v118
    %v658 = vunpack.c.h.b16 %v118
    %v659 = vunpack.c.l.b16 %v119
    %v660 = vunpack.c.h.b16 %v119
    %v661 = vunpack.c.l.b16 %v120
    %v662 = vunpack.c.h.b16 %v120
    %v663 = vunpack.c.l.b16 %v121
    %v664 = vunpack.c.h.b16 %v121
    %v665 = vunpack.c.l.b16 %v122
    %v666 = vunpack.c.h.b16 %v122
    %v667 = vunpack.c.l.b16 %v123
    %v668 = vunpack.c.h.b16 %v123
    %v669 = vunpack.c.l.b16 %v124
    %v670 = vunpack.c.h.b16 %v124
    %v671 = vunpack.c.l.b16 %v125
    %v672 = vunpack.c.h.b16 %v125
    %v673 = vunpack.c.l.b16 %v126
    %v674 = vunpack.c.h.b16 %v126
    %v675 = vunpack.c.l.b16 %v127
    %v676 = vunpack.c.h.b16 %v127
    %v677 = vunpack.c.l.b16 %v128
    %v678 = vunpack.c.h.b16 %v128
    %v679 = vunpack.c.l.b16 %v129
    %v680 = vunpack.c.h.b16 %v129
    %v681 = vunpack.c.l.b16 %v130
    %v682 = vunpack.c.h.b16 %v130
    %v683 = vunpack.c.l.b16 %v131
    %v684 = vunpack.c.h.b16 %v131
    %v685 = vunpack.c.l.b16 %v132
    %v686 = vunpack.c.h.b16 %v132
    %v687 = vunpack.c.l.b16 %v133
    %v688 = vunpack.c.h.b16 %v133
    %v689 = vunpack.c.l.b16 %v134
    %v690 = vunpack.c.h.b16 %v134
    %v691 = vunpack.c.l.b16 %v135
    %v692 = vunpack.c.h.b16 %v135
    %v693 = vunpack.c.l.b16 %v136
    %v694 = vunpack.c.h.b16 %v136
    %v695 = vunpack.c.l.b16 %v137
    %v696 = vunpack.c.h.b16 %v137
    %v697 = vunpack.c.l.b16 %v138
    %v698 = vunpack.c.h.b16 %v138
    %v699 = vunpack.c.l.b16 %v139
    %v700 = vunpack.c.h.b16 %v139
    %v701 = vunpack.c.l.b16 %v140
    %v702 = vunpack.c.h.b16 %v140
    %v703 = vunpack.c.l.b16 %v141
    %v704 = vunpack.c.h.b16 %v141
    %v705 = vunpack.c.l.b16 %v142
    %v706 = vunpack.c.h.b16 %v142
    %v707 = vunpack.c.l.b16 %v143
    %v708 = vunpack.c.h.b16 %v143
    %v709 = vunpack.c.l.b16 %v144
    %v710 = vunpack.c.h.b16 %v144
    %v711 = vunpack.c.l.b16 %v145
    %v712 = vunpack.c.h.b16 %v145
    %v713 = vunpack.c.l.b16 %v146
    %v714 = vunpack.c.h.b16 %v146
    %v715 = vunpack.c.l.b16 %v147
    %v716 = vunpack.c.h.b16 %v147
    %v717 = vunpack.c.l.b16 %v148
    %v718 = vunpack.c.h.b16 %v148
    %v719 = vunpack.c.l.b16 %v149
    %v720 = vunpack.c.h.b16 %v149
    %v721 = vunpack.c.l.b16 %v150
    %v722 = vunpack.c.h.b16 %v150
    %v723 = vunpack.c.l.b16 %v151
    %v724 = vunpack.c.h.b16 %v151
    %v725 = vunpack.c.l.b16 %v152
    %v726 = vunpack.c.h.b16 %v152
    %v727 = vunpack.c.l.b16 %v153
    %v728 = vunpack.c.h.b16 %v153
    %v729 = vunpack.c.l.b16 %v154
    %v730 = vunpack.c.h.b16 %v154
    %v731 = vunpack.c.l.b16 %v155
    %v732 = vunpack.c.h.b16 %v155
    %v733 = vunpack.c.l.b16 %v156
    %v734 = vunpack.c.h.b16 %v156
    %v735 = vunpack.c.l.b16 %v157
    %v736 = vunpack.c.h.b16 %v157
    %v737 = vunpack.c.l.b16 %v158
    %v738 = vunpack.c.h.b16 %v158
    %v739 = vunpack.c.l.b16 %v159
    %v740 = vunpack.c.h.b16 %v159
    %v741 = vunpack.c.l.b16 %v160
    %v742 = vunpack.c.h.b16 %v160
    %v743 = vunpack.c.l.b16 %v161
    %v744 = vunpack.c.h.b16 %v161
    %v745 = vunpack.c.l.b16 %v162
    %v746 = vunpack.c.h.b16 %v162
    %v747 = vunpack.c.l.b16 %v163
    %v748 = vunpack.c.h.b16 %v163
    %v749 = vunpack.c.l.b16 %v164
    %v750 = vunpack.c.h.b16 %v164
    %v751 = vunpack.c.l.b16 %v165
    %v752 = vunpack.c.h.b16 %v165
    %v753 = vunpack.c.l.b16 %v166
    %v754 = vunpack.c.h.b16 %v166
    %v755 = vunpack.c.l.b16 %v167
    %v756 = vunpack.c.h.b16 %v167
    %v757 = vunpack.c.l.b16 %v168
    %v758 = vunpack.c.h.b16 %v168
    %v759 = vunpack.c.l.b16 %v169
    %v760 = vunpack.c.h.b16 %v169
    %v761 = vunpack.c.l.b16 %v170
    %v762 = vunpack.c.h.b16 %v170
    %v763 = vunpack.c.l.b16 %v171
    %v764 = vunpack.c.h.b16 %v171
    %v765 = vunpack.c.l.b16 %v172
    %v766 = vunpack.c.h.b16 %v172
    %v767 = vunpack.c.l.b16 %v173
    %v768 = vunpack.c.h.b16 %v173
    %v769 = vunpack.c.l.b16 %v174
    %v770 = vunpack.c.h.b16 %v174
    %v771 = vunpack.c.l.b16 %v175
    %v772 = vunpack.c.h.b16 %v175
    %v773 = vunpack.c.l.b16 %v176
    %v774 = vunpack.c.h.b16 %v176
    %v775 = vunpack.c.l.b16 %v177
    %v776 = vunpack.c.h.b16 %v177
    %v777 = vunpack.c.l.b16 %v178
    %v778 = vunpack.c.h.b16 %v178
    %v779 = vunpack.c.l.b16 %v179
    %v780 = vunpack.c.h.b16 %v179
    %v781 = vunpack.c.l.b16 %v180
    %v782 = vunpack.c.h.b16 %v180
    %v783 = vunpack.c.l.b16 %v181
    %v784 = vunpack.c.h.b16 %v181
    %v785 = vunpack.c.l.b16 %v182
    %v786 = vunpack.c.h.b16 %v182
    %v787 = vunpack.c.l.b16 %v183
    %v788 = vunpack.c.h.b16 %v183
    %v789 = vunpack.c.l.b16 %v184
    %v790 = vunpack.c.h.b16 %v184
    %v791 = vunpack.c.l.b16 %v185
    %v792 = vunpack.c.h.b16 %v185
    %v793 = vunpack.c.l.b16 %v186
    %v794 = vunpack.c.h.b16 %v186
    %v795 = vunpack.c.l.b16 %v187
    %v796 = vunpack.c.h.b16 %v187
    %v797 = vunpack.c.l.b16 %v188
    %v798 = vunpack.c.h.b16 %v188
    %v799 = vunpack.c.l.b16 %v189
    %v800 = vunpack.c.h.b16 %v189
    %v801 = vunpack.c.l.b16 %v190
    %v802 = vunpack.c.h.b16 %v190
    %v803 = vunpack.c.l.b16 %v191
    %v804 = vunpack.c.h.b16 %v191
    %v805 = vunpack.c.l.b16 %v192
    %v806 = vunpack.c.h.b16 %v192
    %v807 = vunpack.c.l.b16 %v193
    %v808 = vunpack.c.h.b16 %v193
    %v809 = vunpack.c.l.b16 %v194
    %v810 = vunpack.c.h.b16 %v194
    %v811 = vunpack.c.l.b16 %v195
    %v812 = vunpack.c.h.b16 %v195
    %v813 = vunpack.c.l.b16 %v196
    %v814 = vunpack.c.h.b16 %v196
    %v815 = vunpack.c.l.b16 %v197
    %v816 = vunpack.c.h.b16 %v197
    %v817 = vunpack.c.l.b16 %v198
    %v818 = vunpack.c.h.b16 %v198
    %v819 = vunpack.c.l.b16 %v199
    %v820 = vunpack.c.h.b16 %v199
    %v821 = vunpack.c.l.b16 %v200
    %v822 = vunpack.c.h.b16 %v200
    %v823 = vunpack.c.l.b16 %v201
    %v824 = vunpack.c.h.b16 %v201
    %v825 = vunpack.c.l.b16 %v202
    %v826 = vunpack.c.h.b16 %v202
    %v827 = vunpack.c.l.b16 %v203
    %v828 = vunpack.c.h.b16 %v203
    %v829 = vunpack.c.l.b16 %v204
    %v830 = vunpack.c.h.b16 %v204
    %v831 = vunpack.c.l.b16 %v205
    %v832 = vunpack.c.h.b16 %v205
    %v833 = vunpack.c.l.b16 %v206
    %v834 = vunpack.c.h.b16 %v206
    %v835 = vunpack.c.l.b16 %v207
    %v836 = vunpack.c.h.b16 %v207
    %v837 = vunpack.c.l.b16 %v208
    %v838 = vunpack.c.h.b16 %v208
    %v839 = vunpack.c.l.b16 %v209
    %v840 = vunpack.c.h.b16 %v209
    %v841 = vunpack.c.l.b16 %v210
    %v842 = vunpack.c.h.b16 %v210
    %v843 = vunpack.c.l.b16 %v211
    %v844 = vunpack.c.h.b16 %v211
    %v845 = vunpack.c.l.b16 %v212
    %v846 = vunpack.c.h.b16 %v212
    %v847 = vunpack.c.l.b16 %v213
    %v848 = vunpack.c.h.b16 %v213
    %v849 = vunpack.c.l.b16 %v214
    %v850 = vunpack.c.h.b16 %v214
    %v851 = vunpack.c.l.b16 %v215
    %v852 = vunpack.c.h.b16 %v215
    %v853 = vunpack.c.l.b16 %v216
    %v854 = vunpack.c.h.b16 %v216
    %v855 = vunpack.c.l.b16 %v217
    %v856 = vunpack.c.h.b16 %v217
    %v857 = vunpack.c.l.b16 %v218
    %v858 = vunpack.c.h.b16 %v218
    %v859 = vunpack.c.l.b16 %v219
    %v860 = vunpack.c.h.b16 %v219
    %v861 = vunpack.c.l.b16 %v220
    %v862 = vunpack.c.h.b16 %v220
    %v863 = vunpack.c.l.b16 %v221
    %v864 = vunpack.c.h.b16 %v221
    %v865 = vunpack.c.l.b16 %v222
    %v866 = vunpack.c.h.b16 %v222
    %v867 = vunpack.c.l.b16 %v223
    %v868 = vunpack.c.h.b16 %v223
    %v869 = vunpack.c.l.b16 %v224
    %v870 = vunpack.c.h.b16 %v224
    %v871 = vunpack.c.l.b16 %v225
    %v872 = vunpack.c.h.b16 %v225
    %v873 = vunpack.c.l.b16 %v226
    %v874 = vunpack.c.h.b16 %v226
    %v875 = vunpack.c.l.b16 %v227
    %v876 = vunpack.c.h.b16 %v227
    %v877 = vunpack.c.l.b16 %v228
    %v878 = vunpack.c.h.b16 %v228
    %v879 = vunpack.c.l.b16 %v229
    %v880 = vunpack.c.h.b16 %v229
    %v881 = vunpack.c.l.b16 %v230
    %v882 = vunpack.c.h.b16 %v230
    %v883 = vunpack.c.l.b16 %v231
    %v884 = vunpack.c.h.b16 %v231
    %v885 = vunpack.c.l.b16 %v232
    %v886 = vunpack.c.h.b16 %v232
    %v887 = vunpack.c.l.b16 %v233
    %v888 = vunpack.c.h.b16 %v233
    %v889 = vunpack.c.l.b16 %v234
    %v890 = vunpack.c.h.b16 %v234
    %v891 = vunpack.c.l.b16 %v235
    %v892 = vunpack.c.h.b16 %v235
    %v893 = vunpack.c.l.b16 %v236
    %v894 = vunpack.c.h.b16 %v236
    %v895 = vunpack.c.l.b16 %v237
    %v896 = vunpack.c.h.b16 %v237
    %v897 = vunpack.c.l.b16 %v238
    %v898 = vunpack.c.h.b16 %v238
    %v899 = vunpack.c.l.b16 %v239
    %v900 = vunpack.c.h.b16 %v239
    %v901 = vunpack.c.l.b16 %v240
    %v902 = vunpack.c.h.b16 %v240
    %v903 = vunpack.c.l.b16 %v241
    %v904 = vunpack.c.h.b16 %v241
    %v905 = vunpack.c.l.b16 %v242
    %v906 = vunpack.c.h.b16 %v242
    %v907 = vunpack.c.l.b16 %v243
    %v908 = vunpack.c.h.b16 %v243
    %v909 = vunpack.c.l.b16 %v244
    %v910 = vunpack.c.h.b16 %v244
    %v911 = vunpack.c.l.b16 %v245
    %v912 = vunpack.c.h.b16 %v245
    %v913 = vunpack.c.l.b16 %v246
    %v914 = vunpack.c.h.b16 %v246
    %v915 = vunpack.c.l.b16 %v247
    %v916 = vunpack.c.h.b16 %v247
    %v917 = vunpack.c.l.b16 %v248
    %v918 = vunpack.c.h.b16 %v248
    %v919 = vunpack.c.l.b16 %v249
    %v920 = vunpack.c.h.b16 %v249
    %v921 = vunpack.c.l.b16 %v250
    %v922 = vunpack.c.h.b16 %v250
    %v923 = vunpack.c.l.b16 %v251
    %v924 = vunpack.c.h.b16 %v251
    %v925 = vunpack.c.l.b16 %v252
    %v926 = vunpack.c.h.b16 %v252
    %v927 = vunpack.c.l.b16 %v253
    %v928 = vunpack.c.h.b16 %v253
    %v929 = vunpack.c.l.b16 %v254
    %v930 = vunpack.c.h.b16 %v254
    %v931 = vunpack.c.l.b16 %v255
    %v932 = vunpack.c.h.b16 %v255
    %v933 = vunpack.c.l.b16 %v256
    %v934 = vunpack.c.h.b16 %v256
    %v935 = vunpack.c.l.b16 %v257
    %v936 = vunpack.c.h.b16 %v257
    %v937 = vunpack.c.l.b16 %v258
    %v938 = vunpack.c.h.b16 %v258
    %v939 = vunpack.c.l.b16 %v259
    %v940 = vunpack.c.h.b16 %v259
    %v941 = vunpack.c.l.b16 %v260
    %v942 = vunpack.c.h.b16 %v260
    %v943 = vunpack.c.l.b16 %v261
    %v944 = vunpack.c.h.b16 %v261
    %v945 = vunpack.c.l.b16 %v262
    %v946 = vunpack.c.h.b16 %v262
    %v947 = vunpack.c.l.b16 %v263
    %v948 = vunpack.c.h.b16 %v263
    %v949 = vunpack.c.l.b16 %v264
    %v950 = vunpack.c.h.b16 %v264
    %v951 = vunpack.c.l.b16 %v265
    %v952 = vunpack.c.h.b16 %v265
    %v953 = vunpack.c.l.b16 %v266
    %v954 = vunpack.c.h.b16 %v266
    %v955 = vunpack.c.l.b16 %v267
    %v956 = vunpack.c.h.b16 %v267
    %v957 = vunpack.c.l.b16 %v268
    %v958 = vunpack.c.h.b16 %v268
    %v959 = vunpack.c.l.b16 %v269
    %v960 = vunpack.c.h.b16 %v269
    %v961 = vunpack.c.l.b16 %v270
    %v962 = vunpack.c.h.b16 %v270
    %v963 = vunpack.c.l.b16 %v271
    %v964 = vunpack.c.h.b16 %v271
    %v965 = vunpack.c.l.b16 %v272
    %v966 = vunpack.c.h.b16 %v272
    %v967 = vunpack.c.l.b16 %v273
    %v968 = vunpack.c.h.b16 %v273
    %v969 = vunpack.c.l.b16 %v274
    %v970 = vunpack.c.h.b16 %v274
    %v971 = vunpack.c.l.b16 %v275
    %v972 = vunpack.c.h.b16 %v275
    %v973 = vunpack.c.l.b16 %v276
    %v974 = vunpack.c.h.b16 %v276
    %v975 = vunpack.c.l.b16 %v277
    %v976 = vunpack.c.h.b16 %v277
    %v977 = vunpack.c.l.b16 %v278
    %v978 = vunpack.c.h.b16 %v278
    %v979 = vunpack.c.l.b16 %v279
    %v980 = vunpack.c.h.b16 %v279
    %v981 = vunpack.c.l.b16 %v280
    %v982 = vunpack.c.h.b16 %v280
    %v983 = vunpack.c.l.b16 %v281
    %v984 = vunpack.c.h.b16 %v281
    %v985 = vunpack.c.l.b16 %v282
    %v986 = vunpack.c.h.b16 %v282
    %v987 = vunpack.c.l.b16 %v283
    %v988 = vunpack.c.h.b16 %v283
    %v989 = vunpack.c.l.b16 %v284
    %v990 = vunpack.c.h.b16 %v284
    %v991 = vunpack.c.l.b16 %v285
    %v992 = vunpack.c.h.b16 %v285
    %v993 = vunpack.c.l.b16 %v286
    %v994 = vunpack.c.h.b16 %v286
    %v995 = vunpack.c.l.b16 %v287
    %v996 = vunpack.c.h.b16 %v287
    %v997 = vunpack.c.l.b16 %v288
    %v998 = vunpack.c.h.b16 %v288
    %v999 = vunpack.c.l.b16 %v289
    %v1000 = vunpack.c.h.b16 %v289
    %v1001 = vunpack.c.l.b16 %v290
    %v1002 = vunpack.c.h.b16 %v290
    %v1003 = vunpack.c.l.b16 %v291
    %v1004 = vunpack.c.h.b16 %v291
    %v1005 = vunpack.c.l.b16 %v292
    %v1006 = vunpack.c.h.b16 %v292
    %v1007 = vunpack.c.l.b16 %v293
    %v1008 = vunpack.c.h.b16 %v293
    %v1009 = vunpack.c.l.b16 %v294
    %v1010 = vunpack.c.h.b16 %v294
    %v1011 = vunpack.c.l.b16 %v295
    %v1012 = vunpack.c.h.b16 %v295
    %v1013 = vunpack.c.l.b16 %v296
    %v1014 = vunpack.c.h.b16 %v296
    %v1015 = vunpack.c.l.b16 %v297
    %v1016 = vunpack.c.h.b16 %v297
    %v1017 = vunpack.c.l.b16 %v298
    %v1018 = vunpack.c.h.b16 %v298
    %v1019 = vunpack.c.l.b16 %v299
    %v1020 = vunpack.c.h.b16 %v299
    %v1021 = vunpack.c.l.b16 %v300
    %v1022 = vunpack.c.h.b16 %v300
    %v1023 = vunpack.c.l.b16 %v301
    %v1024 = vunpack.c.h.b16 %v301
    %v1025 = vunpack.c.l.b16 %v302
    %v1026 = vunpack.c.h.b16 %v302
    %v1027 = vunpack.c.l.b16 %v303
    %v1028 = vunpack.c.h.b16 %v303
    %v1029 = vunpack.c.l.b16 %v304
    %v1030 = vunpack.c.h.b16 %v304
    %v1031 = vunpack.c.l.b16 %v305
    %v1032 = vunpack.c.h.b16 %v305
    %v1033 = vunpack.c.l.b16 %v306
    %v1034 = vunpack.c.h.b16 %v306
    %v1035 = vunpack.c.l.b16 %v307
    %v1036 = vunpack.c.h.b16 %v307
    %v1037 = vunpack.c.l.b16 %v308
    %v1038 = vunpack.c.h.b16 %v308
    %v1039 = vunpack.c.l.b16 %v309
    %v1040 = vunpack.c.h.b16 %v309
    %v1041 = vunpack.c.l.b16 %v310
    %v1042 = vunpack.c.h.b16 %v310
    %v1043 = vunpack.c.l.b16 %v311
    %v1044 = vunpack.c.h.b16 %v311
    %v1045 = vunpack.c.l.b16 %v312
    %v1046 = vunpack.c.h.b16 %v312
    %v1047 = vunpack.c.l.b16 %v313
    %v1048 = vunpack.c.h.b16 %v313
    %v1049 = vunpack.c.l.b16 %v314
    %v1050 = vunpack.c.h.b16 %v314
    %v1051 = vunpack.c.l.b16 %v315
    %v1052 = vunpack.c.h.b16 %v315
    %v1053 = vunpack.c.l.b16 %v316
    %v1054 = vunpack.c.h.b16 %v316
    %v1055 = vunpack.c.l.b16 %v317
    %v1056 = vunpack.c.h.b16 %v317
    %v1057 = vunpack.c.l.b16 %v318
    %v1058 = vunpack.c.h.b16 %v318
    %v1059 = vunpack.c.l.b16 %v319
    %v1060 = vunpack.c.h.b16 %v319
    %v1061 = vunpack.c.l.b16 %v320
    %v1062 = vunpack.c.h.b16 %v320
    %v1063 = vunpack.c.l.b16 %v321
    %v1064 = vunpack.c.h.b16 %v321
    %v1065 = vunpack.c.l.b16 %v322
    %v1066 = vunpack.c.h.b16 %v322
    %v1067 = vunpack.c.l.b16 %v323
    %v1068 = vunpack.c.h.b16 %v323
    %v1069 = vunpack.c.l.b16 %v324
    %v1070 = vunpack.c.h.b16 %v324
    %v1071 = vunpack.c.l.b16 %v325
    %v1072 = vunpack.c.h.b16 %v325
    %v1073 = vunpack.c.l.b16 %v326
    %v1074 = vunpack.c.h.b16 %v326
    %v1075 = vunpack.c.l.b16 %v327
    %v1076 = vunpack.c.h.b16 %v327
    %v1077 = vunpack.c.l.b16 %v328
    %v1078 = vunpack.c.h.b16 %v328
    %v1079 = vunpack.c.l.b16 %v329
    %v1080 = vunpack.c.h.b16 %v329
    %v1081 = vunpack.c.l.b16 %v330
    %v1082 = vunpack.c.h.b16 %v330
    %v1083 = vunpack.c.l.b16 %v331
    %v1084 = vunpack.c.h.b16 %v331
    %v1085 = vunpack.c.l.b16 %v332
    %v1086 = vunpack.c.h.b16 %v332
    %v1087 = vunpack.c.l.b16 %v333
    %v1088 = vunpack.c.h.b16 %v333
    %v1089 = vunpack.c.l.b16 %v334
    %v1090 = vunpack.c.h.b16 %v334
    %v1091 = vunpack.c.l.b16 %v335
    %v1092 = vunpack.c.h.b16 %v335
    %v1093 = vunpack.c.l.b16 %v336
    %v1094 = vunpack.c.h.b16 %v336
    %v1095 = vunpack.c.l.b16 %v337
    %v1096 = vunpack.c.h.b16 %v337
    %v1097 = vunpack.c.l.b16 %v338
    %v1098 = vunpack.c.h.b16 %v338
    %v1099 = vunpack.c.l.b16 %v339
    %v1100 = vunpack.c.h.b16 %v339
    %v1101 = vunpack.c.l.b16 %v340
    %v1102 = vunpack.c.h.b16 %v340
    %v1103 = vunpack.c.l.b16 %v341
    %v1104 = vunpack.c.h.b16 %v341
    %v1105 = vunpack.c.l.b16 %v342
    %v1106 = vunpack.c.h.b16 %v342
    %v1107 = vunpack.c.l.b16 %v343
    %v1108 = vunpack.c.h.b16 %v343
    %v1109 = vunpack.c.l.b16 %v344
    %v1110 = vunpack.c.h.b16 %v344
    %v1111 = vunpack.c.l.b16 %v345
    %v1112 = vunpack.c.h.b16 %v345
    %v1113 = vunpack.c.l.b16 %v346
    %v1114 = vunpack.c.h.b16 %v346
    %v1115 = vunpack.c.l.b16 %v347
    %v1116 = vunpack.c.h.b16 %v347
    %v1117 = vunpack.c.l.b16 %v348
    %v1118 = vunpack.c.h.b16 %v348
    %v1119 = vunpack.c.l.b16 %v349
    %v1120 = vunpack.c.h.b16 %v349
    %v1121 = vunpack.c.l.b16 %v350
    %v1122 = vunpack.c.h.b16 %v350
    %v1123 = vunpack.c.l.b16 %v351
    %v1124 = vunpack.c.h.b16 %v351
    %v1125 = vunpack.c.l.b16 %v352
    %v1126 = vunpack.c.h.b16 %v352
    %v1127 = vunpack.c.l.b16 %v353
    %v1128 = vunpack.c.h.b16 %v353
    %v1129 = vunpack.c.l.b16 %v354
    %v1130 = vunpack.c.h.b16 %v354
    %v1131 = vunpack.c.l.b16 %v355
    %v1132 = vunpack.c.h.b16 %v355
    %v1133 = vunpack.c.l.b16 %v356
    %v1134 = vunpack.c.h.b16 %v356
    %v1135 = vunpack.c.l.b16 %v357
    %v1136 = vunpack.c.h.b16 %v357
    %v1137 = vunpack.c.l.b16 %v358
    %v1138 = vunpack.c.h.b16 %v358
    %v1139 = vunpack.c.l.b16 %v359
    %v1140 = vunpack.c.h.b16 %v359
    %v1141 = vunpack.c.l.b16 %v360
    %v1142 = vunpack.c.h.b16 %v360
    %v1143 = vunpack.c.l.b16 %v361
    %v1144 = vunpack.c.h.b16 %v361
    %v1145 = vunpack.c.l.b16 %v362
    %v1146 = vunpack.c.h.b16 %v362
    %v1147 = vunpack.c.l.b16 %v363
    %v1148 = vunpack.c.h.b16 %v363
    %v1149 = vunpack.c.l.b16 %v364
    %v1150 = vunpack.c.h.b16 %v364
    %v1151 = vunpack.c.l.b16 %v365
    %v1152 = vunpack.c.h.b16 %v365
    %v1153 = vunpack.c.l.b16 %v366
    %v1154 = vunpack.c.h.b16 %v366
    %v1155 = vunpack.c.l.b16 %v367
    %v1156 = vunpack.c.h.b16 %v367
    %v1157 = vunpack.c.l.b16 %v368
    %v1158 = vunpack.c.h.b16 %v368
    %v1159 = vpack.c.b16 %v651, %v647
    %v1160 = vpack.c.b16 %v652, %v648
    %v1161 = vpack.c.b16 %v653, %v649
    %v1162 = vpack.c.b16 %v654, %v650
    %v1163 = vpack.c.b16 %v659, %v655
    %v1164 = vpack.c.b16 %v660, %v656
    %v1165 = vpack.c.b16 %v661, %v657
    %v1166 = vpack.c.b16 %v662, %v658
    %v1167 = vpack.c.b16 %v667, %v663
    %v1168 = vpack.c.b16 %v668, %v664
    %v1169 = vpack.c.b16 %v669, %v665
    %v1170 = vpack.c.b16 %v670, %v666
    %v1171 = vpack.c.b16 %v675, %v671
    %v1172 = vpack.c.b16 %v676, %v672
    %v1173 = vpack.c.b16 %v677, %v673
    %v1174 = vpack.c.b16 %v678, %v674
    %v1175 = vpack.c.b16 %v683, %v679
    %v1176 = vpack.c.b16 %v684, %v680
    %v1177 = vpack.c.b16 %v685, %v681
    %v1178 = vpack.c.b16 %v686, %v682
    %v1179 = vpack.c.b16 %v691, %v687
    %v1180 = vpack.c.b16 %v692, %v688
    %v1181 = vpack.c.b16 %v693, %v689
    %v1182 = vpack.c.b16 %v694, %v690
    %v1183 = vpack.c.b16 %v699, %v695
    %v1184 = vpack.c.b16 %v700, %v696
    %v1185 = vpack.c.b16 %v701, %v697
    %v1186 = vpack.c.b16 %v702, %v698
    %v1187 = vpack.c.b16 %v707, %v703
    %v1188 = vpack.c.b16 %v708, %v704
    %v1189 = vpack.c.b16 %v709, %v705
    %v1190 = vpack.c.b16 %v710, %v706
    %v1191 = vpack.c.b16 %v715, %v711
    %v1192 = vpack.c.b16 %v716, %v712
    %v1193 = vpack.c.b16 %v717, %v713
    %v1194 = vpack.c.b16 %v718, %v714
    %v1195 = vpack.c.b16 %v723, %v719
    %v1196 = vpack.c.b16 %v724, %v720
    %v1197 = vpack.c.b16 %v725, %v721
    %v1198 = vpack.c.b16 %v726, %v722
    %v1199 = vpack.c.b16 %v731, %v727
    %v1200 = vpack.c.b16 %v732, %v728
    %v1201 = vpack.c.b16 %v733, %v729
    %v1202 = vpack.c.b16 %v734, %v730
    %v1203 = vpack.c.b16 %v739, %v735
    %v1204 = vpack.c.b16 %v740, %v736
    %v1205 = vpack.c.b16 %v741, %v737
    %v1206 = vpack.c.b16 %v742, %v738
    %v1207 = vpack.c.b16 %v747, %v743
    %v1208 = vpack.c.b16 %v748, %v744
    %v1209 = vpack.c.b16 %v749, %v745
    %v1210 = vpack.c.b16 %v750, %v746
    %v1211 = vpack.c.b16 %v755, %v751
    %v1212 = vpack.c.b16 %v756, %v752
    %v1213 = vpack.c.b16 %v757, %v753
    %v1214 = vpack.c.b16 %v758, %v754
    %v1215 = vpack.c.b16 %v763, %v759
    %v1216 = vpack.c.b16 %v764, %v760
    %v1217 = vpack.c.b16 %v765, %v761
    %v1218 = vpack.c.b16 %v766, %v762
    %v1219 = vpack.c.b16 %v771, %v767
    %v1220 = vpack.c.b16 %v772, %v768
    %v1221 = vpack.c.b16 %v773, %v769
    %v1222 = vpack.c.b16 %v774, %v770
    %v1223 = vpack.c.b16 %v779, %v775
    %v1224 = vpack.c.b16 %v780, %v776
    %v1225 = vpack.c.b16 %v781, %v777
    %v1226 = vpack.c.b16 %v782, %v778
    %v1227 = vpack.c.b16 %v787, %v783
    %v1228 = vpack.c.b16 %v788, %v784
    %v1229 = vpack.c.b16 %v789, %v785
    %v1230 = vpack.c.b16 %v790, %v786
    %v1231 = vpack.c.b16 %v795, %v791
    %v1232 = vpack.c.b16 %v796, %v792
    %v1233 = vpack.c.b16 %v797, %v793
    %v1234 = vpack.c.b16 %v798, %v794
    %v1235 = vpack.c.b16 %v803, %v799
    %v1236 = vpack.c.b16 %v804, %v800
    %v1237 = vpack.c.b16 %v805, %v801
    %v1238 = vpack.c.b16 %v806, %v802
    %v1239 = vpack.c.b16 %v811, %v807
    %v1240 = vpack.c.b16 %v812, %v808
    %v1241 = vpack.c.b16 %v813, %v809
    %v1242 = vpack.c.b16 %v814, %v810
    %v1243 = vpack.c.b16 %v819, %v815
    %v1244 = vpack.c.b16 %v820, %v816
    %v1245 = vpack.c.b16 %v821, %v817
    %v1246 = vpack.c.b16 %v822, %v818
    %v1247 = vpack.c.b16 %v827, %v823
    %v1248 = vpack.c.b16 %v828, %v824
    %v1249 = vpack.c.b16 %v829, %v825
    %v1250 = vpack.c.b16 %v830, %v826
    %v1251 = vpack.c.b16 %v835, %v831
    %v1252 = vpack.c.b16 %v836, %v832
    %v1253 = vpack.c.b16 %v837, %v833
    %v1254 = vpack.c.b16 %v838, %v834
    %v1255 = vpack.c.b16 %v843, %v839
    %v1256 = vpack.c.b16 %v844, %v840
    %v1257 = vpack.c.b16 %v845, %v841
    %v1258 = vpack.c.b16 %v846, %v842
    %v1259 = vpack.c.b16 %v851, %v847
    %v1260 = vpack.c.b16 %v852, %v848
    %v1261 = vpack.c.b16 %v853, %v849
    %v1262 = vpack.c.b16 %v854, %v850
    %v1263 = vpack.c.b16 %v859, %v855
    %v1264 = vpack.c.b16 %v860, %v856
    %v1265 = vpack.c.b16 %v861, %v857
    %v1266 = vpack.c.b16 %v862, %v858
    %v1267 = vpack.c.b16 %v867, %v863
    %v1268 = vpack.c.b16 %v868, %v864
    %v1269 = vpack.c.b16 %v869, %v865
    %v1270 = vpack.c.b16 %v870, %v866
    %v1271 = vpack.c.b16 %v875, %v871
    %v1272 = vpack.c.b16 %v876, %v872
    %v1273 = vpack.c.b16 %v877, %v873
    %v1274 = vpack.c.b16 %v878, %v874
    %v1275 = vpack.c.b16 %v883, %v879
    %v1276 = vpack.c.b16 %v884, %v880
    %v1277 = vpack.c.b16 %v885, %v881
    %v1278 = vpack.c.b16 %v886, %v882
    %v1279 = vpack.c.b16 %v891, %v887
    %v1280 = vpack.c.b16 %v892, %v888
    %v1281 = vpack.c.b16 %v893, %v889
    %v1282 = vpack.c.b16 %v894, %v890
    %v1283 = vpack.c.b16 %v899, %v895
    %v1284 = vpack.c.b16 %v900, %v896
    %v1285 = vpack.c.b16 %v901, %v897
    %v1286 = vpack.c.b16 %v902, %v898
    %v1287 = vpack.c.b16 %v907, %v903
    %v1288 = vpack.c.b16 %v908, %v904
    %v1289 = vpack.c.b16 %v909, %v905
    %v1290 = vpack.c.b16 %v910, %v906
    %v1291 = vpack.c.b16 %v915, %v911
    %v1292 = vpack.c.b16 %v916, %v912
    %v1293 = vpack.c.b16 %v917, %v913
    %v1294 = vpack.c.b16 %v918, %v914
    %v1295 = vpack.c.b16 %v923, %v919
    %v1296 = vpack.c.b16 %v924, %v920
    %v1297 = vpack.c.b16 %v925, %v921
    %v1298 = vpack.c.b16 %v926, %v922
    %v1299 = vpack.c.b16 %v931, %v927
    %v1300 = vpack.c.b16 %v932, %v928
    %v1301 = vpack.c.b16 %v933, %v929
    %v1302 = vpack.c.b16 %v934, %v930
    %v1303 = vpack.c.b16 %v939, %v935
    %v1304 = vpack.c.b16 %v940, %v936
    %v1305 = vpack.c.b16 %v941, %v937
    %v1306 = vpack.c.b16 %v942, %v938
    %v1307 = vpack.c.b16 %v947, %v943
    %v1308 = vpack.c.b16 %v948, %v944
    %v1309 = vpack.c.b16 %v949, %v945
    %v1310 = vpack.c.b16 %v950, %v946
    %v1311 = vpack.c.b16 %v955, %v951
    %v1312 = vpack.c.b16 %v956, %v952
    %v1313 = vpack.c.b16 %v957, %v953
    %v1314 = vpack.c.b16 %v958, %v954
    %v1315 = vpack.c.b16 %v963, %v959
    %v1316 = vpack.c.b16 %v964, %v960
    %v1317 = vpack.c.b16 %v965, %v961
    %v1318 = vpack.c.b16 %v966, %v962
    %v1319 = vpack.c.b16 %v971, %v967
    %v1320 = vpack.c.b16 %v972, %v968
    %v1321 = vpack.c.b16 %v973, %v969
    %v1322 = vpack.c.b16 %v974, %v970
    %v1323 = vpack.c.b16 %v979, %v975
    %v1324 = vpack.c.b16 %v980, %v976
    %v1325 = vpack.c.b16 %v981, %v977
    %v1326 = vpack.c.b16 %v982, %v978
    %v1327 = vpack.c.b16 %v987, %v983
    %v1328 = vpack.c.b16 %v988, %v984
    %v1329 = vpack.c.b16 %v989, %v985
    %v1330 = vpack.c.b16 %v990, %v986
    %v1331 = vpack.c.b16 %v995, %v991
    %v1332 = vpack.c.b16 %v996, %v992
    %v1333 = vpack.c.b16 %v997, %v993
    %v1334 = vpack.c.b16 %v998, %v994
    %v1335 = vpack.c.b16 %v1003, %v999
    %v1336 = vpack.c.b16 %v1004, %v1000
    %v1337 = vpack.c.b16 %v1005, %v1001
    %v1338 = vpack.c.b16 %v1006, %v1002
    %v1339 = vpack.c.b16 %v1011, %v1007
    %v1340 = vpack.c.b16 %v1012, %v1008
    %v1341 = vpack.c.b16 %v1013, %v1009
    %v1342 = vpack.c.b16 %v1014, %v1010
    %v1343 = vpack.c.b16 %v1019, %v1015
    %v1344 = vpack.c.b16 %v1020, %v1016
    %v1345 = vpack.c.b16 %v1021, %v1017
    %v1346 = vpack.c.b16 %v1022, %v1018
    %v1347 = vpack.c.b16 %v1027, %v1023
    %v1348 = vpack.c.b16 %v1028, %v1024
    %v1349 = vpack.c.b16 %v1029, %v1025
    %v1350 = vpack.c.b16 %v1030, %v1026
    %v1351 = vpack.c.b16 %v1035, %v1031
    %v1352 = vpack.c.b16 %v1036, %v1032
    %v1353 = vpack.c.b16 %v1037, %v1033
    %v1354 = vpack.c.b16 %v1038, %v1034
    %v1355 = vpack.c.b16 %v1043, %v1039
    %v1356 = vpack.c.b16 %v1044, %v1040
    %v1357 = vpack.c.b16 %v1045, %v1041
    %v1358 = vpack.c.b16 %v1046, %v1042
    %v1359 = vpack.c.b16 %v1051, %v1047
    %v1360 = vpack.c.b16 %v1052, %v1048
    %v1361 = vpack.c.b16 %v1053, %v1049
    %v1362 = vpack.c.b16 %v1054, %v1050
    %v1363 = vpack.c.b16 %v1059, %v1055
    %v1364 = vpack.c.b16 %v1060, %v1056
    %v1365 = vpack.c.b16 %v1061, %v1057
    %v1366 = vpack.c.b16 %v1062, %v1058
    %v1367 = vpack.c.b16 %v1067, %v1063
    %v1368 = vpack.c.b16 %v1068, %v1064
    %v1369 = vpack.c.b16 %v1069, %v1065
    %v1370 = vpack.c.b16 %v1070, %v1066
    %v1371 = vpack.c.b16 %v1075, %v1071
    %v1372 = vpack.c.b16 %v1076, %v1072
    %v1373 = vpack.c.b16 %v1077, %v1073
    %v1374 = vpack.c.b16 %v1078, %v1074
    %v1375 = vpack.c.b16 %v1083, %v1079
    %v1376 = vpack.c.b16 %v1084, %v1080
    %v1377 = vpack.c.b16 %v1085, %v1081
    %v1378 = vpack.c.b16 %v1086, %v1082
    %v1379 = vpack.c.b16 %v1091, %v1087
    %v1380 = vpack.c.b16 %v1092, %v1088
    %v1381 = vpack.c.b16 %v1093, %v1089
    %v1382 = vpack.c.b16 %v1094, %v1090
    %v1383 = vpack.c.b16 %v1099, %v1095
    %v1384 = vpack.c.b16 %v1100, %v1096
    %v1385 = vpack.c.b16 %v1101, %v1097
    %v1386 = vpack.c.b16 %v1102, %v1098
    %v1387 = vpack.c.b16 %v1107, %v1103
    %v1388 = vpack.c.b16 %v1108, %v1104
    %v1389 = vpack.c.b16 %v1109, %v1105
    %v1390 = vpack.c.b16 %v1110, %v1106
    %v1391 = vpack.c.b16 %v1115, %v1111
    %v1392 = vpack.c.b16 %v1116, %v1112
    %v1393 = vpack.c.b16 %v1117, %v1113
    %v1394 = vpack.c.b16 %v1118, %v1114
    %v1395 = vpack.c.b16 %v1123, %v1119
    %v1396 = vpack.c.b16 %v1124, %v1120
    %v1397 = vpack.c.b16 %v1125, %v1121
    %v1398 = vpack.c.b16 %v1126, %v1122
    %v1399 = vpack.c.b16 %v1131, %v1127
    %v1400 = vpack.c.b16 %v1132, %v1128
    %v1401 = vpack.c.b16 %v1133, %v1129
    %v1402 = vpack.c.b16 %v1134, %v1130
    %v1403 = vpack.c.b16 %v1139, %v1135
    %v1404 = vpack.c.b16 %v1140, %v1136
    %v1405 = vpack.c.b16 %v1141, %v1137
    %v1406 = vpack.c.b16 %v1142, %v1138
    %v1407 = vpack.c.b16 %v1147, %v1143
    %v1408 = vpack.c.b16 %v1148, %v1144
    %v1409 = vpack.c.b16 %v1149, %v1145
    %v1410 = vpack.c.b16 %v1150, %v1146
    %v1411 = vpack.c.b16 %v1155, %v1151
    %v1412 = vpack.c.b16 %v1156, %v1152
    %v1413 = vpack.c.b16 %v1157, %v1153
    %v1414 = vpack.c.b16 %v1158, %v1154
    %1671 = vmatprep.subr.bf16.mxu0 %v1160
    %1672 = vmatpush1.bf16.msra.mxu0 %v1159
    %1673 = vmatprep.subr.bf16.mxu0 %v1164
    %1674 = vmatpush1.bf16.msra.mxu0 %v1163
    %1675 = vmatprep.subr.bf16.mxu0 %v1168
    %1676 = vmatpush1.bf16.msra.mxu0 %v1167
    %1677 = vmatprep.subr.bf16.mxu0 %v1172
    %1678 = vmatpush1.bf16.msra.mxu0 %v1171
    %1679 = vmatprep.subr.bf16.mxu0 %v1176
    %1680 = vmatpush1.bf16.msra.mxu0 %v1175
    %1681 = vmatprep.subr.bf16.mxu0 %v1180
    %1682 = vmatpush1.bf16.msra.mxu0 %v1179
    %1683 = vmatprep.subr.bf16.mxu0 %v1184
    %1684 = vmatpush1.bf16.msra.mxu0 %v1183
    %1685 = vmatprep.subr.bf16.mxu0 %v1188
    %1686 = vmatpush1.bf16.msra.mxu0 %v1187
    %1687 = vmatprep.subr.bf16.mxu0 %v1192
    %1688 = vmatpush1.bf16.msra.mxu0 %v1191
    %1689 = vmatprep.subr.bf16.mxu0 %v1196
    %1690 = vmatpush1.bf16.msra.mxu0 %v1195
    %1691 = vmatprep.subr.bf16.mxu0 %v1200
    %1692 = vmatpush1.bf16.msra.mxu0 %v1199
    %1693 = vmatprep.subr.bf16.mxu0 %v1204
    %1694 = vmatpush1.bf16.msra.mxu0 %v1203
    %1695 = vmatprep.subr.bf16.mxu0 %v1208
    %1696 = vmatpush1.bf16.msra.mxu0 %v1207
    %1697 = vmatprep.subr.bf16.mxu0 %v1212
    %1698 = vmatpush1.bf16.msra.mxu0 %v1211
    %1699 = vmatprep.subr.bf16.mxu0 %v1216
    %1700 = vmatpush1.bf16.msra.mxu0 %v1215
    %1701 = vmatprep.subr.bf16.mxu0 %v1220
    %1702 = vmatpush1.bf16.msra.mxu0 %v1219
    %1703 = vmatprep.mubr.bf16.mxu0 %v106
    %1704 = vmatmul.mubr.bf16.gmra.mrb[0].mxu0 %v105
    %v1705 = vpop.f32.mrb[0].mxu0
    %v1706 = vadd.f32 %v374, %v1705
    %v1707 = vpop.f32.mrb[0].mxu0
    %v1708 = vadd.f32 %v378, %v1707
    %v1709 = vpop.f32.mrb[0].mxu0
    %v1710 = vpop.f32.mrb[0].mxu0
    %1711 = vdwg.mxu0
    %1712 = vmatprep.subr.bf16.mxu0 %v1224
    %1713 = vmatpush1.bf16.msra.mxu0 %v1223
    %1714 = vmatprep.subr.bf16.mxu0 %v1228
    %1715 = vmatpush1.bf16.msra.mxu0 %v1227
    %1716 = vmatprep.subr.bf16.mxu0 %v1232
    %1717 = vmatpush1.bf16.msra.mxu0 %v1231
    %1718 = vmatprep.subr.bf16.mxu0 %v1236
    %1719 = vmatpush1.bf16.msra.mxu0 %v1235
    %1720 = vmatprep.subr.bf16.mxu0 %v1240
    %1721 = vmatpush1.bf16.msra.mxu0 %v1239
    %1722 = vmatprep.subr.bf16.mxu0 %v1244
    %1723 = vmatpush1.bf16.msra.mxu0 %v1243
    %1724 = vmatprep.subr.bf16.mxu0 %v1248
    %1725 = vmatpush1.bf16.msra.mxu0 %v1247
    %1726 = vmatprep.subr.bf16.mxu0 %v1252
    %1727 = vmatpush1.bf16.msra.mxu0 %v1251
    %1728 = vmatprep.subr.bf16.mxu0 %v1256
    %1729 = vmatpush1.bf16.msra.mxu0 %v1255
    %1730 = vmatprep.subr.bf16.mxu0 %v1260
    %1731 = vmatpush1.bf16.msra.mxu0 %v1259
    %1732 = vmatprep.subr.bf16.mxu0 %v1264
    %1733 = vmatpush1.bf16.msra.mxu0 %v1263
    %1734 = vmatprep.subr.bf16.mxu0 %v1268
    %1735 = vmatpush1.bf16.msra.mxu0 %v1267
    %1736 = vmatprep.subr.bf16.mxu0 %v1272
    %1737 = vmatpush1.bf16.msra.mxu0 %v1271
    %1738 = vmatprep.subr.bf16.mxu0 %v1276
    %1739 = vmatpush1.bf16.msra.mxu0 %v1275
    %1740 = vmatprep.subr.bf16.mxu0 %v1280
    %1741 = vmatpush1.bf16.msra.mxu0 %v1279
    %1742 = vmatprep.subr.bf16.mxu0 %v1284
    %1743 = vmatpush1.bf16.msra.mxu0 %v1283
    %1744 = vmatprep.mubr.bf16.mxu0 %v108
    %1745 = vmatmul.mubr.bf16.gmra.mrb[0].mxu0 %v107
    %v1746 = vpop.f32.mrb[0].mxu0
    %v1747 = vadd.f32 %v1706, %v1746
    %v1748 = vpop.f32.mrb[0].mxu0
    %v1749 = vadd.f32 %v1708, %v1748
    %v1750 = vpop.f32.mrb[0].mxu0
    %v1751 = vpop.f32.mrb[0].mxu0
    %1752 = vdwg.mxu0
    %1753 = vmatprep.subr.bf16.mxu0 %v1288
    %1754 = vmatpush1.bf16.msra.mxu0 %v1287
    %1755 = vmatprep.subr.bf16.mxu0 %v1292
    %1756 = vmatpush1.bf16.msra.mxu0 %v1291
    %1757 = vmatprep.subr.bf16.mxu0 %v1296
    %1758 = vmatpush1.bf16.msra.mxu0 %v1295
    %1759 = vmatprep.subr.bf16.mxu0 %v1300
    %1760 = vmatpush1.bf16.msra.mxu0 %v1299
    %1761 = vmatprep.subr.bf16.mxu0 %v1304
    %1762 = vmatpush1.bf16.msra.mxu0 %v1303
    %1763 = vmatprep.subr.bf16.mxu0 %v1308
    %1764 = vmatpush1.bf16.msra.mxu0 %v1307
    %1765 = vmatprep.subr.bf16.mxu0 %v1312
    %1766 = vmatpush1.bf16.msra.mxu0 %v1311
    %1767 = vmatprep.subr.bf16.mxu0 %v1316
    %1768 = vmatpush1.bf16.msra.mxu0 %v1315
    %1769 = vmatprep.subr.bf16.mxu0 %v1320
    %1770 = vmatpush1.bf16.msra.mxu0 %v1319
    %1771 = vmatprep.subr.bf16.mxu0 %v1324
    %1772 = vmatpush1.bf16.msra.mxu0 %v1323
    %1773 = vmatprep.subr.bf16.mxu0 %v1328
    %1774 = vmatpush1.bf16.msra.mxu0 %v1327
    %1775 = vmatprep.subr.bf16.mxu0 %v1332
    %1776 = vmatpush1.bf16.msra.mxu0 %v1331
    %1777 = vmatprep.subr.bf16.mxu0 %v1336
    %1778 = vmatpush1.bf16.msra.mxu0 %v1335
    %1779 = vmatprep.subr.bf16.mxu0 %v1340
    %1780 = vmatpush1.bf16.msra.mxu0 %v1339
    %1781 = vmatprep.subr.bf16.mxu0 %v1344
    %1782 = vmatpush1.bf16.msra.mxu0 %v1343
    %1783 = vmatprep.subr.bf16.mxu0 %v1348
    %1784 = vmatpush1.bf16.msra.mxu0 %v1347
    %1785 = vmatprep.mubr.bf16.mxu0 %v110
    %1786 = vmatmul.mubr.bf16.gmra.mrb[0].mxu0 %v109
    %v1787 = vpop.f32.mrb[0].mxu0
    %v1788 = vadd.f32 %v1747, %v1787
    %v1789 = vpop.f32.mrb[0].mxu0
    %v1790 = vadd.f32 %v1749, %v1789
    %v1791 = vpop.f32.mrb[0].mxu0
    %v1792 = vpop.f32.mrb[0].mxu0
    %1793 = vdwg.mxu0
    %1794 = vmatprep.subr.bf16.mxu0 %v1352
    %1795 = vmatpush1.bf16.msra.mxu0 %v1351
    %1796 = vmatprep.subr.bf16.mxu0 %v1356
    %1797 = vmatpush1.bf16.msra.mxu0 %v1355
    %1798 = vmatprep.subr.bf16.mxu0 %v1360
    %1799 = vmatpush1.bf16.msra.mxu0 %v1359
    %1800 = vmatprep.subr.bf16.mxu0 %v1364
    %1801 = vmatpush1.bf16.msra.mxu0 %v1363
    %1802 = vmatprep.subr.bf16.mxu0 %v1368
    %1803 = vmatpush1.bf16.msra.mxu0 %v1367
    %1804 = vmatprep.subr.bf16.mxu0 %v1372
    %1805 = vmatpush1.bf16.msra.mxu0 %v1371
    %1806 = vmatprep.subr.bf16.mxu0 %v1376
    %1807 = vmatpush1.bf16.msra.mxu0 %v1375
    %1808 = vmatprep.subr.bf16.mxu0 %v1380
    %1809 = vmatpush1.bf16.msra.mxu0 %v1379
    %1810 = vmatprep.subr.bf16.mxu0 %v1384
    %1811 = vmatpush1.bf16.msra.mxu0 %v1383
    %1812 = vmatprep.subr.bf16.mxu0 %v1388
    %1813 = vmatpush1.bf16.msra.mxu0 %v1387
    %1814 = vmatprep.subr.bf16.mxu0 %v1392
    %1815 = vmatpush1.bf16.msra.mxu0 %v1391
    %1816 = vmatprep.subr.bf16.mxu0 %v1396
    %1817 = vmatpush1.bf16.msra.mxu0 %v1395
    %1818 = vmatprep.subr.bf16.mxu0 %v1400
    %1819 = vmatpush1.bf16.msra.mxu0 %v1399
    %1820 = vmatprep.subr.bf16.mxu0 %v1404
    %1821 = vmatpush1.bf16.msra.mxu0 %v1403
    %1822 = vmatprep.subr.bf16.mxu0 %v1408
    %1823 = vmatpush1.bf16.msra.mxu0 %v1407
    %1824 = vmatprep.subr.bf16.mxu0 %v1412
    %1825 = vmatpush1.bf16.msra.mxu0 %v1411
    %1826 = vmatprep.mubr.bf16.mxu0 %v112
    %1827 = vmatmul.mubr.bf16.gmra.mrb[0].mxu0 %v111
    %v1828 = vpop.f32.mrb[0].mxu0
    %v1829 = vadd.f32 %v1788, %v1828
    %v1830 = vpop.f32.mrb[0].mxu0
    %v1831 = vadd.f32 %v1790, %v1830
    %v1832 = vpop.f32.mrb[0].mxu0
    %v1833 = vpop.f32.mrb[0].mxu0
    %1834 = vdwg.mxu0
    %1835 = vmatprep.subr.bf16.mxu0 %v1162
    %1836 = vmatpush1.bf16.msra.mxu0 %v1161
    %1837 = vmatprep.subr.bf16.mxu0 %v1166
    %1838 = vmatpush1.bf16.msra.mxu0 %v1165
    %1839 = vmatprep.subr.bf16.mxu0 %v1170
    %1840 = vmatpush1.bf16.msra.mxu0 %v1169
    %1841 = vmatprep.subr.bf16.mxu0 %v1174
    %1842 = vmatpush1.bf16.msra.mxu0 %v1173
    %1843 = vmatprep.subr.bf16.mxu0 %v1178
    %1844 = vmatpush1.bf16.msra.mxu0 %v1177
    %1845 = vmatprep.subr.bf16.mxu0 %v1182
    %1846 = vmatpush1.bf16.msra.mxu0 %v1181
    %1847 = vmatprep.subr.bf16.mxu0 %v1186
    %1848 = vmatpush1.bf16.msra.mxu0 %v1185
    %1849 = vmatprep.subr.bf16.mxu0 %v1190
    %1850 = vmatpush1.bf16.msra.mxu0 %v1189
    %1851 = vmatprep.subr.bf16.mxu0 %v1194
    %1852 = vmatpush1.bf16.msra.mxu0 %v1193
    %1853 = vmatprep.subr.bf16.mxu0 %v1198
    %1854 = vmatpush1.bf16.msra.mxu0 %v1197
    %1855 = vmatprep.subr.bf16.mxu0 %v1202
    %1856 = vmatpush1.bf16.msra.mxu0 %v1201
    %1857 = vmatprep.subr.bf16.mxu0 %v1206
    %1858 = vmatpush1.bf16.msra.mxu0 %v1205
    %1859 = vmatprep.subr.bf16.mxu0 %v1210
    %1860 = vmatpush1.bf16.msra.mxu0 %v1209
    %1861 = vmatprep.subr.bf16.mxu0 %v1214
    %1862 = vmatpush1.bf16.msra.mxu0 %v1213
    %1863 = vmatprep.subr.bf16.mxu0 %v1218
    %1864 = vmatpush1.bf16.msra.mxu0 %v1217
    %1865 = vmatprep.subr.bf16.mxu0 %v1222
    %1866 = vmatpush1.bf16.msra.mxu0 %v1221
    %1867 = vmatprep.mubr.bf16.mxu0 %v106
    %1868 = vmatmul.mubr.bf16.gmra.mrb[0].mxu0 %v105
    %v1869 = vpop.f32.mrb[0].mxu0
    %v1870 = vadd.f32 %v382, %v1869
    %v1871 = vpop.f32.mrb[0].mxu0
    %v1872 = vadd.f32 %v386, %v1871
    %v1873 = vpop.f32.mrb[0].mxu0
    %v1874 = vpop.f32.mrb[0].mxu0
    %1875 = vdwg.mxu0
    %1876 = vmatprep.subr.bf16.mxu0 %v1226
    %1877 = vmatpush1.bf16.msra.mxu0 %v1225
    %1878 = vmatprep.subr.bf16.mxu0 %v1230
    %1879 = vmatpush1.bf16.msra.mxu0 %v1229
    %1880 = vmatprep.subr.bf16.mxu0 %v1234
    %1881 = vmatpush1.bf16.msra.mxu0 %v1233
    %1882 = vmatprep.subr.bf16.mxu0 %v1238
    %1883 = vmatpush1.bf16.msra.mxu0 %v1237
    %1884 = vmatprep.subr.bf16.mxu0 %v1242
    %1885 = vmatpush1.bf16.msra.mxu0 %v1241
    %1886 = vmatprep.subr.bf16.mxu0 %v1246
    %1887 = vmatpush1.bf16.msra.mxu0 %v1245
    %1888 = vmatprep.subr.bf16.mxu0 %v1250
    %1889 = vmatpush1.bf16.msra.mxu0 %v1249
    %1890 = vmatprep.subr.bf16.mxu0 %v1254
    %1891 = vmatpush1.bf16.msra.mxu0 %v1253
    %1892 = vmatprep.subr.bf16.mxu0 %v1258
    %1893 = vmatpush1.bf16.msra.mxu0 %v1257
    %1894 = vmatprep.subr.bf16.mxu0 %v1262
    %1895 = vmatpush1.bf16.msra.mxu0 %v1261
    %1896 = vmatprep.subr.bf16.mxu0 %v1266
    %1897 = vmatpush1.bf16.msra.mxu0 %v1265
    %1898 = vmatprep.subr.bf16.mxu0 %v1270
    %1899 = vmatpush1.bf16.msra.mxu0 %v1269
    %1900 = vmatprep.subr.bf16.mxu0 %v1274
    %1901 = vmatpush1.bf16.msra.mxu0 %v1273
    %1902 = vmatprep.subr.bf16.mxu0 %v1278
    %1903 = vmatpush1.bf16.msra.mxu0 %v1277
    %1904 = vmatprep.subr.bf16.mxu0 %v1282
    %1905 = vmatpush1.bf16.msra.mxu0 %v1281
    %1906 = vmatprep.subr.bf16.mxu0 %v1286
    %1907 = vmatpush1.bf16.msra.mxu0 %v1285
    %1908 = vmatprep.mubr.bf16.mxu0 %v108
    %1909 = vmatmul.mubr.bf16.gmra.mrb[0].mxu0 %v107
    %v1910 = vpop.f32.mrb[0].mxu0
    %v1911 = vadd.f32 %v1870, %v1910
    %v1912 = vpop.f32.mrb[0].mxu0
    %v1913 = vadd.f32 %v1872, %v1912
    %v1914 = vpop.f32.mrb[0].mxu0
    %v1915 = vpop.f32.mrb[0].mxu0
    %1916 = vdwg.mxu0
    %1917 = vmatprep.subr.bf16.mxu0 %v1290
    %1918 = vmatpush1.bf16.msra.mxu0 %v1289
    %1919 = vmatprep.subr.bf16.mxu0 %v1294
    %1920 = vmatpush1.bf16.msra.mxu0 %v1293
    %1921 = vmatprep.subr.bf16.mxu0 %v1298
    %1922 = vmatpush1.bf16.msra.mxu0 %v1297
    %1923 = vmatprep.subr.bf16.mxu0 %v1302
    %1924 = vmatpush1.bf16.msra.mxu0 %v1301
    %1925 = vmatprep.subr.bf16.mxu0 %v1306
    %1926 = vmatpush1.bf16.msra.mxu0 %v1305
    %1927 = vmatprep.subr.bf16.mxu0 %v1310
    %1928 = vmatpush1.bf16.msra.mxu0 %v1309
    %1929 = vmatprep.subr.bf16.mxu0 %v1314
    %1930 = vmatpush1.bf16.msra.mxu0 %v1313
    %1931 = vmatprep.subr.bf16.mxu0 %v1318
    %1932 = vmatpush1.bf16.msra.mxu0 %v1317
    %1933 = vmatprep.subr.bf16.mxu0 %v1322
    %1934 = vmatpush1.bf16.msra.mxu0 %v1321
    %1935 = vmatprep.subr.bf16.mxu0 %v1326
    %1936 = vmatpush1.bf16.msra.mxu0 %v1325
    %1937 = vmatprep.subr.bf16.mxu0 %v1330
    %1938 = vmatpush1.bf16.msra.mxu0 %v1329
    %1939 = vmatprep.subr.bf16.mxu0 %v1334
    %1940 = vmatpush1.bf16.msra.mxu0 %v1333
    %1941 = vmatprep.subr.bf16.mxu0 %v1338
    %1942 = vmatpush1.bf16.msra.mxu0 %v1337
    %1943 = vmatprep.subr.bf16.mxu0 %v1342
    %1944 = vmatpush1.bf16.msra.mxu0 %v1341
    %1945 = vmatprep.subr.bf16.mxu0 %v1346
    %1946 = vmatpush1.bf16.msra.mxu0 %v1345
    %1947 = vmatprep.subr.bf16.mxu0 %v1350
    %1948 = vmatpush1.bf16.msra.mxu0 %v1349
    %1949 = vmatprep.mubr.bf16.mxu0 %v110
    %1950 = vmatmul.mubr.bf16.gmra.mrb[0].mxu0 %v109
    %v1951 = vpop.f32.mrb[0].mxu0
    %v1952 = vadd.f32 %v1911, %v1951
    %v1953 = vpop.f32.mrb[0].mxu0
    %v1954 = vadd.f32 %v1913, %v1953
    %v1955 = vpop.f32.mrb[0].mxu0
    %v1956 = vpop.f32.mrb[0].mxu0
    %1957 = vdwg.mxu0
    %1958 = vmatprep.subr.bf16.mxu0 %v1354
    %1959 = vmatpush1.bf16.msra.mxu0 %v1353
    %1960 = vmatprep.subr.bf16.mxu0 %v1358
    %1961 = vmatpush1.bf16.msra.mxu0 %v1357
    %1962 = vmatprep.subr.bf16.mxu0 %v1362
    %1963 = vmatpush1.bf16.msra.mxu0 %v1361
    %1964 = vmatprep.subr.bf16.mxu0 %v1366
    %1965 = vmatpush1.bf16.msra.mxu0 %v1365
    %1966 = vmatprep.subr.bf16.mxu0 %v1370
    %1967 = vmatpush1.bf16.msra.mxu0 %v1369
    %1968 = vmatprep.subr.bf16.mxu0 %v1374
    %1969 = vmatpush1.bf16.msra.mxu0 %v1373
    %1970 = vmatprep.subr.bf16.mxu0 %v1378
    %1971 = vmatpush1.bf16.msra.mxu0 %v1377
    %1972 = vmatprep.subr.bf16.mxu0 %v1382
    %1973 = vmatpush1.bf16.msra.mxu0 %v1381
    %1974 = vmatprep.subr.bf16.mxu0 %v1386
    %1975 = vmatpush1.bf16.msra.mxu0 %v1385
    %1976 = vmatprep.subr.bf16.mxu0 %v1390
    %1977 = vmatpush1.bf16.msra.mxu0 %v1389
    %1978 = vmatprep.subr.bf16.mxu0 %v1394
    %1979 = vmatpush1.bf16.msra.mxu0 %v1393
    %1980 = vmatprep.subr.bf16.mxu0 %v1398
    %1981 = vmatpush1.bf16.msra.mxu0 %v1397
    %1982 = vmatprep.subr.bf16.mxu0 %v1402
    %1983 = vmatpush1.bf16.msra.mxu0 %v1401
    %1984 = vmatprep.subr.bf16.mxu0 %v1406
    %1985 = vmatpush1.bf16.msra.mxu0 %v1405
    %1986 = vmatprep.subr.bf16.mxu0 %v1410
    %1987 = vmatpush1.bf16.msra.mxu0 %v1409
    %1988 = vmatprep.subr.bf16.mxu0 %v1414
    %1989 = vmatpush1.bf16.msra.mxu0 %v1413
    %1990 = vmatprep.mubr.bf16.mxu0 %v112
    %1991 = vmatmul.mubr.bf16.gmra.mrb[0].mxu0 %v111
    %v1992 = vpop.f32.mrb[0].mxu0
    %v1993 = vadd.f32 %v1952, %v1992
    %v1994 = vpop.f32.mrb[0].mxu0
    %v1995 = vadd.f32 %v1954, %v1994
    %v1996 = vpop.f32.mrb[0].mxu0
    %v1997 = vpop.f32.mrb[0].mxu0
    %1998 = vdwg.mxu0
    %v1999 = vpack.c.bf16 %v1829, %v1829
    %v2000 = vpack.c.bf16 %v1831, %v1831
    %v2001 = vpack.c.bf16 %v1993, %v1993
    %v2002 = vpack.c.bf16 %v1995, %v1995
    %v2003 = vmul.bf16 %v1999, 1045249613
    %v2004 = vmul.bf16 %v2000, 1045249613
    %v2005 = vmul.bf16 %v2001, 1045249613
    %v2006 = vmul.bf16 %v2002, 1045249613
    %v2007 = vmax.bf16 %v1999, %v2003
    %v2008 = vmax.bf16 %v2000, %v2004
    %v2009 = vmax.bf16 %v2001, %v2005
    %v2010 = vmax.bf16 %v2002, %v2006
    %v2011 = vld [vmem:[#allocation6] sm:$0xff]
    %v2012 = vld [vmem:[#allocation6 + $0x8] sm:$0xff]
    %v2013 = vld [vmem:[#allocation6 + $0x10] sm:$0xff]
    %v2014 = vld [vmem:[#allocation6 + $0x18] sm:$0xff]
    %v2015 = vld [vmem:[#allocation6 + $0x20] sm:$0xff]
    %v2016 = vld [vmem:[#allocation6 + $0x28] sm:$0xff]
    %v2017 = vld [vmem:[#allocation6 + $0x30] sm:$0xff]
    %v2018 = vld [vmem:[#allocation6 + $0x38] sm:$0xff]
    %v2019 = vld [vmem:[#allocation6 + $0x40] sm:$0xff]
    %v2020 = vld [vmem:[#allocation6 + $0x48] sm:$0xff]
    %v2021 = vld [vmem:[#allocation6 + $0x50] sm:$0xff]
    %v2022 = vld [vmem:[#allocation6 + $0x58] sm:$0xff]
    %v2023 = vld [vmem:[#allocation6 + $0x60] sm:$0xff]
    %v2024 = vld [vmem:[#allocation6 + $0x68] sm:$0xff]
    %v2025 = vld [vmem:[#allocation6 + $0x70] sm:$0xff]
    %v2026 = vld [vmem:[#allocation6 + $0x78] sm:$0xff]
    %v2027 = vld [vmem:[#allocation6 + $0x80] sm:$0xff]
    %v2028 = vld [vmem:[#allocation6 + $0x88] sm:$0xff]
    %v2029 = vld [vmem:[#allocation6 + $0x90] sm:$0xff]
    %v2030 = vld [vmem:[#allocation6 + $0x98] sm:$0xff]
    %v2031 = vld [vmem:[#allocation6 + $0xa0] sm:$0xff]
    %v2032 = vld [vmem:[#allocation6 + $0xa8] sm:$0xff]
    %v2033 = vld [vmem:[#allocation6 + $0xb0] sm:$0xff]
    %v2034 = vld [vmem:[#allocation6 + $0xb8] sm:$0xff]
    %v2035 = vld [vmem:[#allocation6 + $0xc0] sm:$0xff]
    %v2036 = vld [vmem:[#allocation6 + $0xc8] sm:$0xff]
    %v2037 = vld [vmem:[#allocation6 + $0xd0] sm:$0xff]
    %v2038 = vld [vmem:[#allocation6 + $0xd8] sm:$0xff]
    %v2039 = vld [vmem:[#allocation6 + $0xe0] sm:$0xff]
    %v2040 = vld [vmem:[#allocation6 + $0xe8] sm:$0xff]
    %v2041 = vld [vmem:[#allocation6 + $0xf0] sm:$0xff]
    %v2042 = vld [vmem:[#allocation6 + $0xf8] sm:$0xff]
    %v2043 = vld [vmem:[#allocation6 + $0x100] sm:$0xff]
    %v2044 = vld [vmem:[#allocation6 + $0x108] sm:$0xff]
    %v2045 = vld [vmem:[#allocation6 + $0x110] sm:$0xff]
    %v2046 = vld [vmem:[#allocation6 + $0x118] sm:$0xff]
    %v2047 = vld [vmem:[#allocation6 + $0x120] sm:$0xff]
    %v2048 = vld [vmem:[#allocation6 + $0x128] sm:$0xff]
    %v2049 = vld [vmem:[#allocation6 + $0x130] sm:$0xff]
    %v2050 = vld [vmem:[#allocation6 + $0x138] sm:$0xff]
    %v2051 = vld [vmem:[#allocation6 + $0x140] sm:$0xff]
    %v2052 = vld [vmem:[#allocation6 + $0x148] sm:$0xff]
    %v2053 = vld [vmem:[#allocation6 + $0x150] sm:$0xff]
    %v2054 = vld [vmem:[#allocation6 + $0x158] sm:$0xff]
    %v2055 = vld [vmem:[#allocation6 + $0x160] sm:$0xff]
    %v2056 = vld [vmem:[#allocation6 + $0x168] sm:$0xff]
    %v2057 = vld [vmem:[#allocation6 + $0x170] sm:$0xff]
    %v2058 = vld [vmem:[#allocation6 + $0x178] sm:$0xff]
    %v2059 = vld [vmem:[#allocation6 + $0x180] sm:$0xff]
    %v2060 = vld [vmem:[#allocation6 + $0x188] sm:$0xff]
    %v2061 = vld [vmem:[#allocation6 + $0x190] sm:$0xff]
    %v2062 = vld [vmem:[#allocation6 + $0x198] sm:$0xff]
    %v2063 = vld [vmem:[#allocation6 + $0x1a0] sm:$0xff]
    %v2064 = vld [vmem:[#allocation6 + $0x1a8] sm:$0xff]
    %v2065 = vld [vmem:[#allocation6 + $0x1b0] sm:$0xff]
    %v2066 = vld [vmem:[#allocation6 + $0x1b8] sm:$0xff]
    %v2067 = vld [vmem:[#allocation6 + $0x1c0] sm:$0xff]
    %v2068 = vld [vmem:[#allocation6 + $0x1c8] sm:$0xff]
    %v2069 = vld [vmem:[#allocation6 + $0x1d0] sm:$0xff]
    %v2070 = vld [vmem:[#allocation6 + $0x1d8] sm:$0xff]
    %v2071 = vld [vmem:[#allocation6 + $0x1e0] sm:$0xff]
    %v2072 = vld [vmem:[#allocation6 + $0x1e8] sm:$0xff]
    %v2073 = vld [vmem:[#allocation6 + $0x1f0] sm:$0xff]
    %v2074 = vld [vmem:[#allocation6 + $0x1f8] sm:$0xff]
    %v2075 = vld [vmem:[%s4] sm:$0x3]
    %v2077 = vlaneseq
    %v2078 = vshrl.u32 %v2077, 7
    %v2079 = vsub.s32 0, %v2078
    %v2080 = vrot.slane %v2075, %v2079
    %v2081 = vlaneseq
    %v2082 = vshrl.u32 %v2081, 7
    %v2083 = vsub.s32 1, %v2082
    %v2084 = vrot.slane %v2075, %v2083
    %v2151 = vunpack.c.l.b16 %v2011
    %v2152 = vunpack.c.h.b16 %v2011
    %v2153 = vunpack.c.l.b16 %v2012
    %v2154 = vunpack.c.h.b16 %v2012
    %v2155 = vunpack.c.l.b16 %v2013
    %v2156 = vunpack.c.h.b16 %v2013
    %v2157 = vunpack.c.l.b16 %v2014
    %v2158 = vunpack.c.h.b16 %v2014
    %v2159 = vunpack.c.l.b16 %v2015
    %v2160 = vunpack.c.h.b16 %v2015
    %v2161 = vunpack.c.l.b16 %v2016
    %v2162 = vunpack.c.h.b16 %v2016
    %v2163 = vunpack.c.l.b16 %v2017
    %v2164 = vunpack.c.h.b16 %v2017
    %v2165 = vunpack.c.l.b16 %v2018
    %v2166 = vunpack.c.h.b16 %v2018
    %v2167 = vunpack.c.l.b16 %v2019
    %v2168 = vunpack.c.h.b16 %v2019
    %v2169 = vunpack.c.l.b16 %v2020
    %v2170 = vunpack.c.h.b16 %v2020
    %v2171 = vunpack.c.l.b16 %v2021
    %v2172 = vunpack.c.h.b16 %v2021
    %v2173 = vunpack.c.l.b16 %v2022
    %v2174 = vunpack.c.h.b16 %v2022
    %v2175 = vunpack.c.l.b16 %v2023
    %v2176 = vunpack.c.h.b16 %v2023
    %v2177 = vunpack.c.l.b16 %v2024
    %v2178 = vunpack.c.h.b16 %v2024
    %v2179 = vunpack.c.l.b16 %v2025
    %v2180 = vunpack.c.h.b16 %v2025
    %v2181 = vunpack.c.l.b16 %v2026
    %v2182 = vunpack.c.h.b16 %v2026
    %v2183 = vunpack.c.l.b16 %v2027
    %v2184 = vunpack.c.h.b16 %v2027
    %v2185 = vunpack.c.l.b16 %v2028
    %v2186 = vunpack.c.h.b16 %v2028
    %v2187 = vunpack.c.l.b16 %v2029
    %v2188 = vunpack.c.h.b16 %v2029
    %v2189 = vunpack.c.l.b16 %v2030
    %v2190 = vunpack.c.h.b16 %v2030
    %v2191 = vunpack.c.l.b16 %v2031
    %v2192 = vunpack.c.h.b16 %v2031
    %v2193 = vunpack.c.l.b16 %v2032
    %v2194 = vunpack.c.h.b16 %v2032
    %v2195 = vunpack.c.l.b16 %v2033
    %v2196 = vunpack.c.h.b16 %v2033
    %v2197 = vunpack.c.l.b16 %v2034
    %v2198 = vunpack.c.h.b16 %v2034
    %v2199 = vunpack.c.l.b16 %v2035
    %v2200 = vunpack.c.h.b16 %v2035
    %v2201 = vunpack.c.l.b16 %v2036
    %v2202 = vunpack.c.h.b16 %v2036
    %v2203 = vunpack.c.l.b16 %v2037
    %v2204 = vunpack.c.h.b16 %v2037
    %v2205 = vunpack.c.l.b16 %v2038
    %v2206 = vunpack.c.h.b16 %v2038
    %v2207 = vunpack.c.l.b16 %v2039
    %v2208 = vunpack.c.h.b16 %v2039
    %v2209 = vunpack.c.l.b16 %v2040
    %v2210 = vunpack.c.h.b16 %v2040
    %v2211 = vunpack.c.l.b16 %v2041
    %v2212 = vunpack.c.h.b16 %v2041
    %v2213 = vunpack.c.l.b16 %v2042
    %v2214 = vunpack.c.h.b16 %v2042
    %v2215 = vunpack.c.l.b16 %v2043
    %v2216 = vunpack.c.h.b16 %v2043
    %v2217 = vunpack.c.l.b16 %v2044
    %v2218 = vunpack.c.h.b16 %v2044
    %v2219 = vunpack.c.l.b16 %v2045
    %v2220 = vunpack.c.h.b16 %v2045
    %v2221 = vunpack.c.l.b16 %v2046
    %v2222 = vunpack.c.h.b16 %v2046
    %v2223 = vunpack.c.l.b16 %v2047
    %v2224 = vunpack.c.h.b16 %v2047
    %v2225 = vunpack.c.l.b16 %v2048
    %v2226 = vunpack.c.h.b16 %v2048
    %v2227 = vunpack.c.l.b16 %v2049
    %v2228 = vunpack.c.h.b16 %v2049
    %v2229 = vunpack.c.l.b16 %v2050
    %v2230 = vunpack.c.h.b16 %v2050
    %v2231 = vunpack.c.l.b16 %v2051
    %v2232 = vunpack.c.h.b16 %v2051
    %v2233 = vunpack.c.l.b16 %v2052
    %v2234 = vunpack.c.h.b16 %v2052
    %v2235 = vunpack.c.l.b16 %v2053
    %v2236 = vunpack.c.h.b16 %v2053
    %v2237 = vunpack.c.l.b16 %v2054
    %v2238 = vunpack.c.h.b16 %v2054
    %v2239 = vunpack.c.l.b16 %v2055
    %v2240 = vunpack.c.h.b16 %v2055
    %v2241 = vunpack.c.l.b16 %v2056
    %v2242 = vunpack.c.h.b16 %v2056
    %v2243 = vunpack.c.l.b16 %v2057
    %v2244 = vunpack.c.h.b16 %v2057
    %v2245 = vunpack.c.l.b16 %v2058
    %v2246 = vunpack.c.h.b16 %v2058
    %v2247 = vunpack.c.l.b16 %v2059
    %v2248 = vunpack.c.h.b16 %v2059
    %v2249 = vunpack.c.l.b16 %v2060
    %v2250 = vunpack.c.h.b16 %v2060
    %v2251 = vunpack.c.l.b16 %v2061
    %v2252 = vunpack.c.h.b16 %v2061
    %v2253 = vunpack.c.l.b16 %v2062
    %v2254 = vunpack.c.h.b16 %v2062
    %v2255 = vunpack.c.l.b16 %v2063
    %v2256 = vunpack.c.h.b16 %v2063
    %v2257 = vunpack.c.l.b16 %v2064
    %v2258 = vunpack.c.h.b16 %v2064
    %v2259 = vunpack.c.l.b16 %v2065
    %v2260 = vunpack.c.h.b16 %v2065
    %v2261 = vunpack.c.l.b16 %v2066
    %v2262 = vunpack.c.h.b16 %v2066
    %v2263 = vunpack.c.l.b16 %v2067
    %v2264 = vunpack.c.h.b16 %v2067
    %v2265 = vunpack.c.l.b16 %v2068
    %v2266 = vunpack.c.h.b16 %v2068
    %v2267 = vunpack.c.l.b16 %v2069
    %v2268 = vunpack.c.h.b16 %v2069
    %v2269 = vunpack.c.l.b16 %v2070
    %v2270 = vunpack.c.h.b16 %v2070
    %v2271 = vunpack.c.l.b16 %v2071
    %v2272 = vunpack.c.h.b16 %v2071
    %v2273 = vunpack.c.l.b16 %v2072
    %v2274 = vunpack.c.h.b16 %v2072
    %v2275 = vunpack.c.l.b16 %v2073
    %v2276 = vunpack.c.h.b16 %v2073
    %v2277 = vunpack.c.l.b16 %v2074
    %v2278 = vunpack.c.h.b16 %v2074
    %v2279 = vpack.c.b16 %v2153, %v2151
    %v2280 = vpack.c.b16 %v2154, %v2152
    %v2281 = vpack.c.b16 %v2157, %v2155
    %v2282 = vpack.c.b16 %v2158, %v2156
    %v2283 = vpack.c.b16 %v2161, %v2159
    %v2284 = vpack.c.b16 %v2162, %v2160
    %v2285 = vpack.c.b16 %v2165, %v2163
    %v2286 = vpack.c.b16 %v2166, %v2164
    %v2287 = vpack.c.b16 %v2169, %v2167
    %v2288 = vpack.c.b16 %v2170, %v2168
    %v2289 = vpack.c.b16 %v2173, %v2171
    %v2290 = vpack.c.b16 %v2174, %v2172
    %v2291 = vpack.c.b16 %v2177, %v2175
    %v2292 = vpack.c.b16 %v2178, %v2176
    %v2293 = vpack.c.b16 %v2181, %v2179
    %v2294 = vpack.c.b16 %v2182, %v2180
    %v2295 = vpack.c.b16 %v2185, %v2183
    %v2296 = vpack.c.b16 %v2186, %v2184
    %v2297 = vpack.c.b16 %v2189, %v2187
    %v2298 = vpack.c.b16 %v2190, %v2188
    %v2299 = vpack.c.b16 %v2193, %v2191
    %v2300 = vpack.c.b16 %v2194, %v2192
    %v2301 = vpack.c.b16 %v2197, %v2195
    %v2302 = vpack.c.b16 %v2198, %v2196
    %v2303 = vpack.c.b16 %v2201, %v2199
    %v2304 = vpack.c.b16 %v2202, %v2200
    %v2305 = vpack.c.b16 %v2205, %v2203
    %v2306 = vpack.c.b16 %v2206, %v2204
    %v2307 = vpack.c.b16 %v2209, %v2207
    %v2308 = vpack.c.b16 %v2210, %v2208
    %v2309 = vpack.c.b16 %v2213, %v2211
    %v2310 = vpack.c.b16 %v2214, %v2212
    %v2311 = vpack.c.b16 %v2217, %v2215
    %v2312 = vpack.c.b16 %v2218, %v2216
    %v2313 = vpack.c.b16 %v2221, %v2219
    %v2314 = vpack.c.b16 %v2222, %v2220
    %v2315 = vpack.c.b16 %v2225, %v2223
    %v2316 = vpack.c.b16 %v2226, %v2224
    %v2317 = vpack.c.b16 %v2229, %v2227
    %v2318 = vpack.c.b16 %v2230, %v2228
    %v2319 = vpack.c.b16 %v2233, %v2231
    %v2320 = vpack.c.b16 %v2234, %v2232
    %v2321 = vpack.c.b16 %v2237, %v2235
    %v2322 = vpack.c.b16 %v2238, %v2236
    %v2323 = vpack.c.b16 %v2241, %v2239
    %v2324 = vpack.c.b16 %v2242, %v2240
    %v2325 = vpack.c.b16 %v2245, %v2243
    %v2326 = vpack.c.b16 %v2246, %v2244
    %v2327 = vpack.c.b16 %v2249, %v2247
    %v2328 = vpack.c.b16 %v2250, %v2248
    %v2329 = vpack.c.b16 %v2253, %v2251
    %v2330 = vpack.c.b16 %v2254, %v2252
    %v2331 = vpack.c.b16 %v2257, %v2255
    %v2332 = vpack.c.b16 %v2258, %v2256
    %v2333 = vpack.c.b16 %v2261, %v2259
    %v2334 = vpack.c.b16 %v2262, %v2260
    %v2335 = vpack.c.b16 %v2265, %v2263
    %v2336 = vpack.c.b16 %v2266, %v2264
    %v2337 = vpack.c.b16 %v2269, %v2267
    %v2338 = vpack.c.b16 %v2270, %v2268
    %v2339 = vpack.c.b16 %v2273, %v2271
    %v2340 = vpack.c.b16 %v2274, %v2272
    %v2341 = vpack.c.b16 %v2277, %v2275
    %v2342 = vpack.c.b16 %v2278, %v2276
    %2407 = vmatprep.subr.bf16.mxu0 %v2280
    %2408 = vmatpush1.bf16.msra.mxu0 %v2279
    %2409 = vmatprep.subr.bf16.mxu0 %v2282
    %2410 = vmatpush1.bf16.msra.mxu0 %v2281
    %2411 = vmatprep.subr.bf16.mxu0 %v2284
    %2412 = vmatpush1.bf16.msra.mxu0 %v2283
    %2413 = vmatprep.subr.bf16.mxu0 %v2286
    %2414 = vmatpush1.bf16.msra.mxu0 %v2285
    %2415 = vmatprep.subr.bf16.mxu0 %v2288
    %2416 = vmatpush1.bf16.msra.mxu0 %v2287
    %2417 = vmatprep.subr.bf16.mxu0 %v2290
    %2418 = vmatpush1.bf16.msra.mxu0 %v2289
    %2419 = vmatprep.subr.bf16.mxu0 %v2292
    %2420 = vmatpush1.bf16.msra.mxu0 %v2291
    %2421 = vmatprep.subr.bf16.mxu0 %v2294
    %2422 = vmatpush1.bf16.msra.mxu0 %v2293
    %2423 = vmatprep.subr.bf16.mxu0 %v2296
    %2424 = vmatpush1.bf16.msra.mxu0 %v2295
    %2425 = vmatprep.subr.bf16.mxu0 %v2298
    %2426 = vmatpush1.bf16.msra.mxu0 %v2297
    %2427 = vmatprep.subr.bf16.mxu0 %v2300
    %2428 = vmatpush1.bf16.msra.mxu0 %v2299
    %2429 = vmatprep.subr.bf16.mxu0 %v2302
    %2430 = vmatpush1.bf16.msra.mxu0 %v2301
    %2431 = vmatprep.subr.bf16.mxu0 %v2304
    %2432 = vmatpush1.bf16.msra.mxu0 %v2303
    %2433 = vmatprep.subr.bf16.mxu0 %v2306
    %2434 = vmatpush1.bf16.msra.mxu0 %v2305
    %2435 = vmatprep.subr.bf16.mxu0 %v2308
    %2436 = vmatpush1.bf16.msra.mxu0 %v2307
    %2437 = vmatprep.subr.bf16.mxu0 %v2310
    %2438 = vmatpush1.bf16.msra.mxu0 %v2309
    %2439 = vmatprep.mubr.bf16.mxu0 %v2008
    %2440 = vmatmul.mubr.bf16.gmra.mrb[0].mxu0 %v2007
    %v2441 = vpop.f32.mrb[0].mxu0
    %v2442 = vadd.f32 %v2080, %v2441
    %v2443 = vpop.f32.mrb[0].mxu0
    %v2444 = vadd.f32 %v2084, %v2443
    %v2445 = vpop.f32.mrb[0].mxu0
    %v2446 = vpop.f32.mrb[0].mxu0
    %2447 = vdwg.mxu0
    %2448 = vmatprep.subr.bf16.mxu0 %v2312
    %2449 = vmatpush1.bf16.msra.mxu0 %v2311
    %2450 = vmatprep.subr.bf16.mxu0 %v2314
    %2451 = vmatpush1.bf16.msra.mxu0 %v2313
    %2452 = vmatprep.subr.bf16.mxu0 %v2316
    %2453 = vmatpush1.bf16.msra.mxu0 %v2315
    %2454 = vmatprep.subr.bf16.mxu0 %v2318
    %2455 = vmatpush1.bf16.msra.mxu0 %v2317
    %2456 = vmatprep.subr.bf16.mxu0 %v2320
    %2457 = vmatpush1.bf16.msra.mxu0 %v2319
    %2458 = vmatprep.subr.bf16.mxu0 %v2322
    %2459 = vmatpush1.bf16.msra.mxu0 %v2321
    %2460 = vmatprep.subr.bf16.mxu0 %v2324
    %2461 = vmatpush1.bf16.msra.mxu0 %v2323
    %2462 = vmatprep.subr.bf16.mxu0 %v2326
    %2463 = vmatpush1.bf16.msra.mxu0 %v2325
    %2464 = vmatprep.subr.bf16.mxu0 %v2328
    %2465 = vmatpush1.bf16.msra.mxu0 %v2327
    %2466 = vmatprep.subr.bf16.mxu0 %v2330
    %2467 = vmatpush1.bf16.msra.mxu0 %v2329
    %2468 = vmatprep.subr.bf16.mxu0 %v2332
    %2469 = vmatpush1.bf16.msra.mxu0 %v2331
    %2470 = vmatprep.subr.bf16.mxu0 %v2334
    %2471 = vmatpush1.bf16.msra.mxu0 %v2333
    %2472 = vmatprep.subr.bf16.mxu0 %v2336
    %2473 = vmatpush1.bf16.msra.mxu0 %v2335
    %2474 = vmatprep.subr.bf16.mxu0 %v2338
    %2475 = vmatpush1.bf16.msra.mxu0 %v2337
    %2476 = vmatprep.subr.bf16.mxu0 %v2340
    %2477 = vmatpush1.bf16.msra.mxu0 %v2339
    %2478 = vmatprep.subr.bf16.mxu0 %v2342
    %2479 = vmatpush1.bf16.msra.mxu0 %v2341
    %2480 = vmatprep.mubr.bf16.mxu0 %v2010
    %2481 = vmatmul.mubr.bf16.gmra.mrb[0].mxu0 %v2009
    %v2482 = vpop.f32.mrb[0].mxu0
    %v2483 = vadd.f32 %v2442, %v2482
    %v2484 = vpop.f32.mrb[0].mxu0
    %v2485 = vadd.f32 %v2444, %v2484
    %v2486 = vpop.f32.mrb[0].mxu0
    %v2487 = vpop.f32.mrb[0].mxu0
    %2488 = vdwg.mxu0
    %v2489 = vpack.c.bf16 %v2483, %v2483
    %v2490 = vpack.c.bf16 %v2485, %v2485
    %v2491 = vmul.bf16 %v2489, 1045249613
    %v2492 = vmul.bf16 %v2490, 1045249613
    %v2493 = vmax.bf16 %v2489, %v2491
    %v2494 = vmax.bf16 %v2490, %v2492
    %v2495 = vld [vmem:[%s5] sm:$0x3]
    %v2496 = vld [vmem:[#allocation2] sm:$0x1]
    %2498 = vset.pattern.permute.xlu0 0
    %2499 = vperm.xlu0 %2498, %v2496
    %v2500 = vpop.permute.xlu0 %2499
    %v2502 = vlaneseq
    %v2503 = vshrl.u32 %v2502, 7
    %v2504 = vsub.s32 0, %v2503
    %v2505 = vrot.slane %v2500, %v2504
    %v2508 = vunpack.c.l.s4 1966171168
    %v2509 = vunpack.c.0.s8 %v2508
    %v2510 = vlaneseq
    %v2511 = vshrl.u32 %v2510, 7
    %v2512 = vsub.s32 %v2509, %v2511
    %v2513 = vrot.slane %v2495, %v2512
    %v2514 = vcombine.high %v2513, %v2513
    %v2516 = vunpack.c.l.s4 1966171168
    %v2517 = vunpack.c.0.s8 %v2516
    %v2518 = vlaneseq
    %v2519 = vshrl.u32 %v2518, 7
    %v2520 = vsub.s32 %v2517, %v2519
    %v2521 = vrot.slane %v2513, %v2520
    %v2523 = vunpack.c.l.s4 1966171168
    %v2524 = vunpack.c.0.s8 %v2523
    %v2525 = vlaneseq
    %v2526 = vshrl.u32 %v2525, 7
    %v2527 = vsub.s32 %v2524, %v2526
    %v2528 = vrot.slane %v2514, %v2527
    %2531 = vmatprep.subr.bf16.mxu0 %v2494
    %2532 = vmatpush1.bf16.xpose.msra.mxu0 %v2493
    %2533 = vmatprep.subr.bf16.mxu0 0
    %2534 = vmatpush1.bf16.xpose.msra.mxu0 0
    %2535 = vmatprep.subr.bf16.mxu0 0
    %2536 = vmatpush1.bf16.xpose.msra.mxu0 0
    %2537 = vmatprep.subr.bf16.mxu0 0
    %2538 = vmatpush1.bf16.xpose.msra.mxu0 0
    %2539 = vmatprep.subr.bf16.mxu0 0
    %2540 = vmatpush1.bf16.xpose.msra.mxu0 0
    %2541 = vmatprep.subr.bf16.mxu0 0
    %2542 = vmatpush1.bf16.xpose.msra.mxu0 0
    %2543 = vmatprep.subr.bf16.mxu0 0
    %2544 = vmatpush1.bf16.xpose.msra.mxu0 0
    %2545 = vmatprep.subr.bf16.mxu0 0
    %2546 = vmatpush1.bf16.xpose.msra.mxu0 0
    %2547 = vmatprep.subr.bf16.mxu0 0
    %2548 = vmatpush1.bf16.xpose.msra.mxu0 0
    %2549 = vmatprep.subr.bf16.mxu0 0
    %2550 = vmatpush1.bf16.xpose.msra.mxu0 0
    %2551 = vmatprep.subr.bf16.mxu0 0
    %2552 = vmatpush1.bf16.xpose.msra.mxu0 0
    %2553 = vmatprep.subr.bf16.mxu0 0
    %2554 = vmatpush1.bf16.xpose.msra.mxu0 0
    %2555 = vmatprep.subr.bf16.mxu0 0
    %2556 = vmatpush1.bf16.xpose.msra.mxu0 0
    %2557 = vmatprep.subr.bf16.mxu0 0
    %2558 = vmatpush1.bf16.xpose.msra.mxu0 0
    %2559 = vmatprep.subr.bf16.mxu0 0
    %2560 = vmatpush1.bf16.xpose.msra.mxu0 0
    %2561 = vmatprep.subr.bf16.mxu0 0
    %2562 = vmatpush1.bf16.xpose.msra.mxu0 0
    %2563 = vmatprep.mubr.bf16.mxu0 %v2528
    %2564 = vmatmul.mubr.bf16.gmra.mrb[0].mxu0 %v2521
    %v2565 = vpop.f32.mrb[0].mxu0
    %v2566 = vadd.f32 %v2505, %v2565
    %v2567 = vpop.f32.mrb[0].mxu0
    %v2568 = vpop.f32.mrb[0].mxu0
    %v2569 = vpop.f32.mrb[0].mxu0
    %2570 = vdwg.mxu0
    %vm2571 = vcmask 8192
    %2572 = vst.msk [vmem:[#allocation8] sm:$0x1] %vm2571, %v2566
    // Predicated region
    $region38: #{discriminator_forward.1} parent=1 // pred_check
      _
    $region39: #{discriminator_forward.1} parent=1 // pred_check_branch
      %2574 = sbr.rel (0) target = $region41
    $region40: #{discriminator_forward.1} parent=1 // pred_region
      %s2576 = ssub.s32 16, 16
      %2577 = vsyncadd [#allocation5], %s2576
      %s2579 = sshll.u32 [#allocation8], 4
      %s2580 = int_to_ptr.vmem [resolvable:$true] %s2579
      %2582 = dma.vmem_to_hbm [thread:$0]  %s2580, 16, %s7, [#allocation5]
    $region41: #{discriminator_forward.1} parent=1 // pred_fallthru
      _
    // Predicated region
    $region42: #{discriminator_forward.1} parent=1 // pred_check
      _
    $region43: #{discriminator_forward.1} parent=1 // pred_check_branch
      %2584 = sbr.rel (0) target = $region45
    $region44: #{discriminator_forward.1} parent=1 // pred_region
      %2585 = dma.done [#allocation5], 16
    $region45: #{discriminator_forward.1} parent=1 // pred_fallthru
      _
    %2586 = vsyncpa [#allocation4], 1
    %2587 = vsyncpa [#allocation7], 1
    %2588 = vsyncpa [#allocation5], 1

</llo_original>
